<compile_context>
chip_gen: v7x
topology: tpu7x:2x2x1
jax: 0.10.0
libtpu: 0.0.40
codegen_flags: <defaults>
</compile_context>

<pallas_src>
import jax
import jax.numpy as jnp
from jax import lax
from jax.experimental import pallas as pl
from jax.experimental.pallas import tpu as pltpu


VMEM_LIMIT_BYTES = 32 * 1024 * 1024   # safe scoped-VMEM ceiling on v5e / v6e / v7x


def _round_up(x, m):
    return ((x + m - 1) // m) * m


def _pick_batch_tile(batch, seq_len, hidden, t_pad, vmem_budget=VMEM_LIMIT_BYTES):
    """Pick the largest batch tile whose double-buffered working set (streamed seq tile,
    masks, pooled, output) plus resident weights fits inside the scoped-VMEM budget with
    headroom.  Bigger tiles amortize the ~0.35 us/step pipeline overhead (mem-bound)."""
    # Resident weights / biases (Pallas still double-buffers constant-index inputs).
    weight_bytes = 2 * (hidden * hidden            # dense_w
                        + 3 * hidden * t_pad       # hidden2tag_w slabs
                        + 8 * hidden               # dense_b, gamma, beta (sublane pad)
                        + 2 * t_pad) * 4           # hidden2tag_b
    # Per batch-row footprint of the streamed tiles (double-buffered below).
    per_row = (seq_len * hidden     # sequence_output tile
               + 8 * seq_len        # stacked masks [2,S] sublane-padded to 8
               + hidden             # pooled tile
               + t_pad) * 4         # output tile
    headroom = 4 * 1024 * 1024
    avail = vmem_budget - weight_bytes - headroom
    avail = max(avail, 2 * 8 * per_row)
    rows = avail // (2 * per_row)                  # 2x for double buffering
    rows = max(8, (rows // 8) * 8)
    return min(batch, rows)


def sentence_re_kernel(seq_ref, pooled_ref, masks_ref,
                       dw_ref, db_ref, g_ref, b_ref, hw_ref, hb_ref,
                       out_ref):
    seq = seq_ref[...]            # [TB, S, D] f32
    pooled = pooled_ref[...]      # [TB, D]
    masks = masks_ref[...]        # [TB, 2, S]   (row 0: e1 mask, row 1: e2 mask)

    tb = pooled.shape[0]
    d = pooled.shape[-1]

    # ---- entity average as ONE batched MXU contraction ----------------------
    # Fold 1/length into the mask so the matmul directly produces the mean.
    length = jnp.sum((masks != 0).astype(jnp.float32), axis=-1, keepdims=True)   # [TB,2,1]
    inv_len = pl.reciprocal(jnp.maximum(length, 1.0), approx=False)              # guard empty mask
    ent = jnp.einsum("bes,bsd->bed", masks * inv_len, seq,
                     preferred_element_type=jnp.float32)                         # [TB,2,D]

    # ---- dense + tanh, fused over both entities ------------------------------
    # Sublane-axis concat -> a dense [2*TB, D] MXU operand (no middle-dim layout waste).
    e12 = jnp.concatenate([ent[:, 0, :], ent[:, 1, :]], axis=0)                  # [2*TB, D]
    e12 = jnp.tanh(jnp.dot(e12, dw_ref[...],
                           preferred_element_type=jnp.float32) + db_ref[...])
    e1_h = e12[:tb]                                                              # [TB, D]
    e2_h = e12[tb:]                                                              # [TB, D]

    # ---- LayerNorm over the virtual concat [pooled | e1_h | e2_h] ------------
    n = 3.0 * d
    mu = (jnp.sum(pooled, axis=-1, keepdims=True)
          + jnp.sum(e1_h, axis=-1, keepdims=True)
          + jnp.sum(e2_h, axis=-1, keepdims=True)) / n
    var = (jnp.sum((pooled - mu) ** 2, axis=-1, keepdims=True)
           + jnp.sum((e1_h - mu) ** 2, axis=-1, keepdims=True)
           + jnp.sum((e2_h - mu) ** 2, axis=-1, keepdims=True)) / n
    inv_std = lax.rsqrt(var + 1e-5)                                              # PyTorch LN eps

    g = g_ref[...]                # [3, 1, D]
    b = b_ref[...]                # [3, 1, D]
    n0 = (pooled - mu) * inv_std * g[0] + b[0]
    n1 = (e1_h - mu) * inv_std * g[1] + b[1]
    n2 = (e2_h - mu) * inv_std * g[2] + b[2]

    # ---- hidden2tag as three D-wide slabs summed (== [TB,3D] @ [3D,Tpad]) ----
    hw = hw_ref[...]              # [3, D, Tpad]
    out_ref[...] = (jnp.dot(n0, hw[0], preferred_element_type=jnp.float32)
                    + jnp.dot(n1, hw[1], preferred_element_type=jnp.float32)
                    + jnp.dot(n2, hw[2], preferred_element_type=jnp.float32)
                    + hb_ref[...])


def sentence_re_forward(sequence_output, pooled_output, e1_mask, e2_mask, params,
                        *, batch_tile=None):
    B, S, D = sequence_output.shape
    T = params["hidden2tag_w"].shape[1]
    T_pad = _round_up(T, 128)                     # lane-dense output stores

    TB = batch_tile or _pick_batch_tile(B, S, D, T_pad)
    grid = (pl.cdiv(B, TB),)

    seq = sequence_output.astype(jnp.float32)
    pooled = pooled_output.astype(jnp.float32)
    masks = jnp.stack([e1_mask, e2_mask], axis=1).astype(jnp.float32)    # [B, 2, S]

    dw = params["dense_w"].astype(jnp.float32)                           # [D, D]
    db = params["dense_b"].reshape(1, D).astype(jnp.float32)             # [1, D]
    g = params["norm_g"].reshape(3, 1, D).astype(jnp.float32)            # [3, 1, D]
    b = params["norm_b"].reshape(3, 1, D).astype(jnp.float32)            # [3, 1, D]
    hw = (jnp.zeros((3 * D, T_pad), jnp.float32)
          .at[:, :T].set(params["hidden2tag_w"].astype(jnp.float32))
          .reshape(3, D, T_pad))                                         # [3, D, Tpad]
    hb = (jnp.zeros((1, T_pad), jnp.float32)
          .at[:, :T].set(params["hidden2tag_b"].reshape(1, T).astype(jnp.float32)))

    logits_padded = pl.pallas_call(
        sentence_re_kernel,
        out_shape=jax.ShapeDtypeStruct((B, T_pad), jnp.float32),
        grid=grid,
        in_specs=[
            pl.BlockSpec((TB, S, D), lambda i: (i, 0, 0)),        # seq tile (streamed)
            pl.BlockSpec((TB, D), lambda i: (i, 0)),              # pooled tile
            pl.BlockSpec((TB, 2, S), lambda i: (i, 0, 0)),        # stacked masks tile
            pl.BlockSpec((D, D), lambda i: (0, 0)),               # dense_w (resident)
            pl.BlockSpec((1, D), lambda i: (0, 0)),               # dense_b
            pl.BlockSpec((3, 1, D), lambda i: (0, 0, 0)),         # norm gamma
            pl.BlockSpec((3, 1, D), lambda i: (0, 0, 0)),         # norm beta
            pl.BlockSpec((3, D, T_pad), lambda i: (0, 0, 0)),     # hidden2tag_w (resident)
            pl.BlockSpec((1, T_pad), lambda i: (0, 0)),           # hidden2tag_b
        ],
        out_specs=pl.BlockSpec((TB, T_pad), lambda i: (i, 0)),
        compiler_params=pltpu.CompilerParams(
            dimension_semantics=("parallel",),
            vmem_limit_bytes=VMEM_LIMIT_BYTES),
    )(seq, pooled, masks, dw, db, g, b, hw, hb)

    return logits_padded[:, :T]


def reference_forward(sequence_output, pooled_output, e1_mask, e2_mask, params):
    def ent_avg(mask):
        s = jnp.einsum("bs,bsd->bd", mask, sequence_output)
        l = jnp.sum((mask != 0).astype(jnp.float32), axis=1, keepdims=True)
        return s / l

    e1 = jnp.tanh(ent_avg(e1_mask) @ params["dense_w"] + params["dense_b"])
    e2 = jnp.tanh(ent_avg(e2_mask) @ params["dense_w"] + params["dense_b"])
    cat = jnp.concatenate([pooled_output, e1, e2], axis=-1)
    mu = jnp.mean(cat, axis=-1, keepdims=True)
    var = jnp.mean((cat - mu) ** 2, axis=-1, keepdims=True)
    normed = (cat - mu) / jnp.sqrt(var + 1e-5) * params["norm_g"] + params["norm_b"]
    return normed @ params["hidden2tag_w"] + params["hidden2tag_b"]


if __name__ == "__main__":
    B, S, D, T = 8, 16, 32, 12  # batch, max_seq_len, embedding_dim, tagset_size

    key = jax.random.PRNGKey(0)
    k_seq, k_pool, k_dw, k_db, k_hw, k_hb = jax.random.split(key, 6)

    sequence_output = jax.random.normal(k_seq, (B, S, D), dtype=jnp.float32)
    pooled_output = jax.random.normal(k_pool, (B, D), dtype=jnp.float32)

    # deterministic entity masks: entity1 spans tokens [2, 2+1+b%3), entity2 spans [8, 8+2+b%4)
    pos = jnp.arange(S)[None, :]
    b_idx = jnp.arange(B)[:, None]
    e1_mask = ((pos >= 2) & (pos < 2 + 1 + b_idx % 3)).astype(jnp.float32)
    e2_mask = ((pos >= 8) & (pos < 8 + 2 + b_idx % 4)).astype(jnp.float32)

    params = {
        "dense_w": 0.02 * jax.random.normal(k_dw, (D, D), dtype=jnp.float32),
        "dense_b": 0.02 * jax.random.normal(k_db, (D,), dtype=jnp.float32),
        "norm_g": jnp.ones((3 * D,), dtype=jnp.float32),
        "norm_b": jnp.zeros((3 * D,), dtype=jnp.float32),
        "hidden2tag_w": 0.02 * jax.random.normal(k_hw, (3 * D, T), dtype=jnp.float32),
        "hidden2tag_b": 0.02 * jax.random.normal(k_hb, (T,), dtype=jnp.float32),
    }

    logits = sentence_re_forward(sequence_output, pooled_output, e1_mask, e2_mask, params)
    logits = jax.block_until_ready(logits)

    ref = reference_forward(sequence_output, pooled_output, e1_mask, e2_mask, params)
    assert logits.shape == (B, T)
    assert jnp.allclose(logits, ref, rtol=1e-4, atol=1e-4), "mismatch vs reference"

    print("KERNEL_OK")
</pallas_src>

<mosaic_0001>
module attributes {stable_mosaic.version = 11 : i64} {
  func.func @sentence_re_kernel(%arg0: i32, %arg1: memref<8x16x32xf32, #tpu.memory_space<vmem>>, %arg2: memref<8x32xf32, #tpu.memory_space<vmem>>, %arg3: memref<8x2x16xf32, #tpu.memory_space<vmem>>, %arg4: memref<32x32xf32, #tpu.memory_space<vmem>>, %arg5: memref<1x32xf32, #tpu.memory_space<vmem>>, %arg6: memref<3x1x32xf32, #tpu.memory_space<vmem>>, %arg7: memref<3x1x32xf32, #tpu.memory_space<vmem>>, %arg8: memref<3x32x128xf32, #tpu.memory_space<vmem>>, %arg9: memref<1x128xf32, #tpu.memory_space<vmem>>, %arg10: memref<8x128xf32, #tpu.memory_space<vmem>>) attributes {dimension_semantics = [#tpu.dimension_semantics<parallel>], iteration_bounds = array<i64: 1>, scalar_prefetch = 0 : i64, scratch_operands = 0 : i64, tpu.core_type = #tpu.core_type<tc>, window_params = [{transform_indices = @transform_0, window_bounds = array<i64: 8, 16, 32>}, {transform_indices = @transform_1, window_bounds = array<i64: 8, 32>}, {transform_indices = @transform_2, window_bounds = array<i64: 8, 2, 16>}, {pipeline_mode = #tpu.pipeline_mode<synchronous>, transform_indices = @transform_3, window_bounds = array<i64: 32, 32>}, {pipeline_mode = #tpu.pipeline_mode<synchronous>, transform_indices = @transform_4, window_bounds = array<i64: 1, 32>}, {pipeline_mode = #tpu.pipeline_mode<synchronous>, transform_indices = @transform_5, window_bounds = array<i64: 3, 1, 32>}, {pipeline_mode = #tpu.pipeline_mode<synchronous>, transform_indices = @transform_6, window_bounds = array<i64: 3, 1, 32>}, {pipeline_mode = #tpu.pipeline_mode<synchronous>, transform_indices = @transform_7, window_bounds = array<i64: 3, 32, 128>}, {pipeline_mode = #tpu.pipeline_mode<synchronous>, transform_indices = @transform_8, window_bounds = array<i64: 1, 128>}, {transform_indices = @transform_9, window_bounds = array<i64: 8, 128>}]} {
    %c0 = arith.constant 0 : index
    %c0_0 = arith.constant 0 : index
    %c0_1 = arith.constant 0 : index
    %0 = vector.load %arg1[%c0, %c0_0, %c0_1] : memref<8x16x32xf32, #tpu.memory_space<vmem>>, vector<8x16x32xf32>
    %c0_2 = arith.constant 0 : index
    %c0_3 = arith.constant 0 : index
    %1 = vector.load %arg2[%c0_2, %c0_3] : memref<8x32xf32, #tpu.memory_space<vmem>>, vector<8x32xf32>
    %c0_4 = arith.constant 0 : index
    %c0_5 = arith.constant 0 : index
    %c0_6 = arith.constant 0 : index
    %2 = vector.load %arg3[%c0_4, %c0_5, %c0_6] : memref<8x2x16xf32, #tpu.memory_space<vmem>>, vector<8x2x16xf32>
    %cst = arith.constant 0.000000e+00 : f32
    %3 = vector.broadcast %cst : f32 to vector<8x2x16xf32>
    %4 = arith.cmpf one, %2, %3 : vector<8x2x16xf32>
    %5 = arith.extui %4 : vector<8x2x16xi1> to vector<8x2x16xi32>
    %6 = arith.sitofp %5 : vector<8x2x16xi32> to vector<8x2x16xf32>
    %cst_7 = arith.constant dense<0.000000e+00> : vector<8x2xf32>
    %7 = vector.multi_reduction <add>, %6, %cst_7 [2] : vector<8x2x16xf32> to vector<8x2xf32>
    %8 = vector.shape_cast %7 : vector<8x2xf32> to vector<8x2x1xf32>
    %cst_8 = arith.constant 1.000000e+00 : f32
    %9 = vector.broadcast %cst_8 : f32 to vector<8x2x1xf32>
    %10 = arith.maximumf %8, %9 : vector<8x2x1xf32>
    %11 = tpu.reciprocal %10 : vector<8x2x1xf32> -> vector<8x2x1xf32>
    %12 = vector.broadcast %11 : vector<8x2x1xf32> to vector<8x2x16xf32>
    %13 = arith.mulf %2, %12 : vector<8x2x16xf32>
    "tpu.trace_start"() <{level = 10 : i32, message = "bes,bsd->bed"}> : () -> ()
    %cst_9 = arith.constant dense<0.000000e+00> : vector<8x2x32xf32>
    %14 = tpu.matmul %13, %0, %cst_9 {dimension_numbers = #tpu.dot_dimension_numbers<[2], [1], [1], [2], [0, 0, 0, 1, 1, 2], [0], [0]>} : vector<8x2x16xf32>, vector<8x16x32xf32>, vector<8x2x32xf32> -> vector<8x2x32xf32>
    "tpu.trace_stop"() : () -> ()
    %15 = vector.extract_strided_slice %14 {offsets = [0, 0, 0], sizes = [8, 1, 32], strides = [1, 1, 1]} : vector<8x2x32xf32> to vector<8x1x32xf32>
    %16 = vector.shape_cast %15 : vector<8x1x32xf32> to vector<8x32xf32>
    %17 = vector.extract_strided_slice %14 {offsets = [0, 1, 0], sizes = [8, 1, 32], strides = [1, 1, 1]} : vector<8x2x32xf32> to vector<8x1x32xf32>
    %18 = vector.shape_cast %17 : vector<8x1x32xf32> to vector<8x32xf32>
    %19 = tpu.concatenate %16, %18 in 0 : vector<8x32xf32>, vector<8x32xf32> -> vector<16x32xf32>
    %c0_10 = arith.constant 0 : index
    %c0_11 = arith.constant 0 : index
    %20 = vector.load %arg4[%c0_10, %c0_11] : memref<32x32xf32, #tpu.memory_space<vmem>>, vector<32x32xf32>
    %cst_12 = arith.constant dense<0.000000e+00> : vector<16x32xf32>
    %21 = tpu.matmul %19, %20, %cst_12 {dimension_numbers = #tpu.dot_dimension_numbers<[1], [0], [0], [1], [0, 0, 1, 1], [], []>} : vector<16x32xf32>, vector<32x32xf32>, vector<16x32xf32> -> vector<16x32xf32>
    %c0_13 = arith.constant 0 : index
    %c0_14 = arith.constant 0 : index
    %22 = vector.load %arg5[%c0_13, %c0_14] : memref<1x32xf32, #tpu.memory_space<vmem>>, vector<1x32xf32>
    %23 = vector.broadcast %22 : vector<1x32xf32> to vector<16x32xf32>
    %24 = arith.addf %21, %23 : vector<16x32xf32>
    %25 = math.tanh %24 : vector<16x32xf32>
    %26 = vector.extract_strided_slice %25 {offsets = [0, 0], sizes = [8, 32], strides = [1, 1]} : vector<16x32xf32> to vector<8x32xf32>
    %27 = vector.extract_strided_slice %25 {offsets = [8, 0], sizes = [8, 32], strides = [1, 1]} : vector<16x32xf32> to vector<8x32xf32>
    %cst_15 = arith.constant dense<0.000000e+00> : vector<8xf32>
    %28 = vector.multi_reduction <add>, %1, %cst_15 [1] : vector<8x32xf32> to vector<8xf32>
    %29 = vector.shape_cast %28 : vector<8xf32> to vector<8x1xf32>
    %cst_16 = arith.constant dense<0.000000e+00> : vector<8xf32>
    %30 = vector.multi_reduction <add>, %26, %cst_16 [1] : vector<8x32xf32> to vector<8xf32>
    %31 = vector.shape_cast %30 : vector<8xf32> to vector<8x1xf32>
    %32 = arith.addf %29, %31 : vector<8x1xf32>
    %cst_17 = arith.constant dense<0.000000e+00> : vector<8xf32>
    %33 = vector.multi_reduction <add>, %27, %cst_17 [1] : vector<8x32xf32> to vector<8xf32>
    %34 = vector.shape_cast %33 : vector<8xf32> to vector<8x1xf32>
    %35 = arith.addf %32, %34 : vector<8x1xf32>
    %cst_18 = arith.constant 9.600000e+01 : f32
    %36 = vector.broadcast %cst_18 : f32 to vector<8x1xf32>
    %37 = arith.divf %35, %36 : vector<8x1xf32>
    %38 = vector.broadcast %37 : vector<8x1xf32> to vector<8x32xf32>
    %39 = arith.subf %1, %38 : vector<8x32xf32>
    %40 = arith.mulf %39, %39 : vector<8x32xf32>
    %cst_19 = arith.constant dense<0.000000e+00> : vector<8xf32>
    %41 = vector.multi_reduction <add>, %40, %cst_19 [1] : vector<8x32xf32> to vector<8xf32>
    %42 = vector.shape_cast %41 : vector<8xf32> to vector<8x1xf32>
    %43 = vector.broadcast %37 : vector<8x1xf32> to vector<8x32xf32>
    %44 = arith.subf %26, %43 : vector<8x32xf32>
    %45 = arith.mulf %44, %44 : vector<8x32xf32>
    %cst_20 = arith.constant dense<0.000000e+00> : vector<8xf32>
    %46 = vector.multi_reduction <add>, %45, %cst_20 [1] : vector<8x32xf32> to vector<8xf32>
    %47 = vector.shape_cast %46 : vector<8xf32> to vector<8x1xf32>
    %48 = arith.addf %42, %47 : vector<8x1xf32>
    %49 = vector.broadcast %37 : vector<8x1xf32> to vector<8x32xf32>
    %50 = arith.subf %27, %49 : vector<8x32xf32>
    %51 = arith.mulf %50, %50 : vector<8x32xf32>
    %cst_21 = arith.constant dense<0.000000e+00> : vector<8xf32>
    %52 = vector.multi_reduction <add>, %51, %cst_21 [1] : vector<8x32xf32> to vector<8xf32>
    %53 = vector.shape_cast %52 : vector<8xf32> to vector<8x1xf32>
    %54 = arith.addf %48, %53 : vector<8x1xf32>
    %cst_22 = arith.constant 9.600000e+01 : f32
    %55 = vector.broadcast %cst_22 : f32 to vector<8x1xf32>
    %56 = arith.divf %54, %55 : vector<8x1xf32>
    %cst_23 = arith.constant 9.99999974E-6 : f32
    %57 = vector.broadcast %cst_23 : f32 to vector<8x1xf32>
    %58 = arith.addf %56, %57 : vector<8x1xf32>
    %59 = math.rsqrt %58 : vector<8x1xf32>
    %c0_24 = arith.constant 0 : index
    %c0_25 = arith.constant 0 : index
    %c0_26 = arith.constant 0 : index
    %60 = vector.load %arg6[%c0_24, %c0_25, %c0_26] : memref<3x1x32xf32, #tpu.memory_space<vmem>>, vector<3x1x32xf32>
    %c0_27 = arith.constant 0 : index
    %c0_28 = arith.constant 0 : index
    %c0_29 = arith.constant 0 : index
    %61 = vector.load %arg7[%c0_27, %c0_28, %c0_29] : memref<3x1x32xf32, #tpu.memory_space<vmem>>, vector<3x1x32xf32>
    %62 = vector.broadcast %37 : vector<8x1xf32> to vector<8x32xf32>
    %63 = arith.subf %1, %62 : vector<8x32xf32>
    %64 = vector.broadcast %59 : vector<8x1xf32> to vector<8x32xf32>
    %65 = arith.mulf %63, %64 : vector<8x32xf32>
    %66 = vector.extract_strided_slice %60 {offsets = [0, 0, 0], sizes = [1, 1, 32], strides = [1, 1, 1]} : vector<3x1x32xf32> to vector<1x1x32xf32>
    %67 = vector.shape_cast %66 : vector<1x1x32xf32> to vector<1x32xf32>
    %68 = vector.broadcast %67 : vector<1x32xf32> to vector<8x32xf32>
    %69 = arith.mulf %65, %68 : vector<8x32xf32>
    %70 = vector.extract_strided_slice %61 {offsets = [0, 0, 0], sizes = [1, 1, 32], strides = [1, 1, 1]} : vector<3x1x32xf32> to vector<1x1x32xf32>
    %71 = vector.shape_cast %70 : vector<1x1x32xf32> to vector<1x32xf32>
    %72 = vector.broadcast %71 : vector<1x32xf32> to vector<8x32xf32>
    %73 = arith.addf %69, %72 : vector<8x32xf32>
    %74 = vector.broadcast %37 : vector<8x1xf32> to vector<8x32xf32>
    %75 = arith.subf %26, %74 : vector<8x32xf32>
    %76 = vector.broadcast %59 : vector<8x1xf32> to vector<8x32xf32>
    %77 = arith.mulf %75, %76 : vector<8x32xf32>
    %78 = vector.extract_strided_slice %60 {offsets = [1, 0, 0], sizes = [1, 1, 32], strides = [1, 1, 1]} : vector<3x1x32xf32> to vector<1x1x32xf32>
    %79 = vector.shape_cast %78 : vector<1x1x32xf32> to vector<1x32xf32>
    %80 = vector.broadcast %79 : vector<1x32xf32> to vector<8x32xf32>
    %81 = arith.mulf %77, %80 : vector<8x32xf32>
    %82 = vector.extract_strided_slice %61 {offsets = [1, 0, 0], sizes = [1, 1, 32], strides = [1, 1, 1]} : vector<3x1x32xf32> to vector<1x1x32xf32>
    %83 = vector.shape_cast %82 : vector<1x1x32xf32> to vector<1x32xf32>
    %84 = vector.broadcast %83 : vector<1x32xf32> to vector<8x32xf32>
    %85 = arith.addf %81, %84 : vector<8x32xf32>
    %86 = vector.broadcast %37 : vector<8x1xf32> to vector<8x32xf32>
    %87 = arith.subf %27, %86 : vector<8x32xf32>
    %88 = vector.broadcast %59 : vector<8x1xf32> to vector<8x32xf32>
    %89 = arith.mulf %87, %88 : vector<8x32xf32>
    %90 = vector.extract_strided_slice %60 {offsets = [2, 0, 0], sizes = [1, 1, 32], strides = [1, 1, 1]} : vector<3x1x32xf32> to vector<1x1x32xf32>
    %91 = vector.shape_cast %90 : vector<1x1x32xf32> to vector<1x32xf32>
    %92 = vector.broadcast %91 : vector<1x32xf32> to vector<8x32xf32>
    %93 = arith.mulf %89, %92 : vector<8x32xf32>
    %94 = vector.extract_strided_slice %61 {offsets = [2, 0, 0], sizes = [1, 1, 32], strides = [1, 1, 1]} : vector<3x1x32xf32> to vector<1x1x32xf32>
    %95 = vector.shape_cast %94 : vector<1x1x32xf32> to vector<1x32xf32>
    %96 = vector.broadcast %95 : vector<1x32xf32> to vector<8x32xf32>
    %97 = arith.addf %93, %96 : vector<8x32xf32>
    %c0_30 = arith.constant 0 : index
    %c0_31 = arith.constant 0 : index
    %c0_32 = arith.constant 0 : index
    %98 = vector.load %arg8[%c0_30, %c0_31, %c0_32] : memref<3x32x128xf32, #tpu.memory_space<vmem>>, vector<3x32x128xf32>
    %99 = vector.extract_strided_slice %98 {offsets = [0, 0, 0], sizes = [1, 32, 128], strides = [1, 1, 1]} : vector<3x32x128xf32> to vector<1x32x128xf32>
    %100 = vector.shape_cast %99 : vector<1x32x128xf32> to vector<32x128xf32>
    %cst_33 = arith.constant dense<0.000000e+00> : vector<8x128xf32>
    %101 = tpu.matmul %73, %100, %cst_33 {dimension_numbers = #tpu.dot_dimension_numbers<[1], [0], [0], [1], [0, 0, 1, 1], [], []>} : vector<8x32xf32>, vector<32x128xf32>, vector<8x128xf32> -> vector<8x128xf32>
    %102 = vector.extract_strided_slice %98 {offsets = [1, 0, 0], sizes = [1, 32, 128], strides = [1, 1, 1]} : vector<3x32x128xf32> to vector<1x32x128xf32>
    %103 = vector.shape_cast %102 : vector<1x32x128xf32> to vector<32x128xf32>
    %cst_34 = arith.constant dense<0.000000e+00> : vector<8x128xf32>
    %104 = tpu.matmul %85, %103, %cst_34 {dimension_numbers = #tpu.dot_dimension_numbers<[1], [0], [0], [1], [0, 0, 1, 1], [], []>} : vector<8x32xf32>, vector<32x128xf32>, vector<8x128xf32> -> vector<8x128xf32>
    %105 = arith.addf %101, %104 : vector<8x128xf32>
    %106 = vector.extract_strided_slice %98 {offsets = [2, 0, 0], sizes = [1, 32, 128], strides = [1, 1, 1]} : vector<3x32x128xf32> to vector<1x32x128xf32>
    %107 = vector.shape_cast %106 : vector<1x32x128xf32> to vector<32x128xf32>
    %cst_35 = arith.constant dense<0.000000e+00> : vector<8x128xf32>
    %108 = tpu.matmul %97, %107, %cst_35 {dimension_numbers = #tpu.dot_dimension_numbers<[1], [0], [0], [1], [0, 0, 1, 1], [], []>} : vector<8x32xf32>, vector<32x128xf32>, vector<8x128xf32> -> vector<8x128xf32>
    %109 = arith.addf %105, %108 : vector<8x128xf32>
    %c0_36 = arith.constant 0 : index
    %c0_37 = arith.constant 0 : index
    %110 = vector.load %arg9[%c0_36, %c0_37] : memref<1x128xf32, #tpu.memory_space<vmem>>, vector<1x128xf32>
    %111 = vector.broadcast %110 : vector<1x128xf32> to vector<8x128xf32>
    %112 = arith.addf %109, %111 : vector<8x128xf32>
    %c0_38 = arith.constant 0 : index
    %c0_39 = arith.constant 0 : index
    %113 = vector.load %arg10[%c0_38, %c0_39] : memref<8x128xf32, #tpu.memory_space<vmem>>, vector<8x128xf32>
    tpu.vector_store %arg10[%c0_38, %c0_39], %112 {strides = array<i32>} : memref<8x128xf32, #tpu.memory_space<vmem>>, vector<8x128xf32>,
    return
  }
  func.func @transform_0(%arg0: i32) -> (i32, i32, i32) {
    %c0_i32 = arith.constant 0 : i32
    %c0_i32_0 = arith.constant 0 : i32
    %c0_i32_1 = arith.constant 0 : i32
    return %arg0, %c0_i32, %c0_i32_0 : i32, i32, i32
  }
  func.func @transform_1(%arg0: i32) -> (i32, i32) {
    %c0_i32 = arith.constant 0 : i32
    %c0_i32_0 = arith.constant 0 : i32
    return %arg0, %c0_i32 : i32, i32
  }
  func.func @transform_2(%arg0: i32) -> (i32, i32, i32) {
    %c0_i32 = arith.constant 0 : i32
    %c0_i32_0 = arith.constant 0 : i32
    %c0_i32_1 = arith.constant 0 : i32
    return %arg0, %c0_i32, %c0_i32_0 : i32, i32, i32
  }
  func.func @transform_3(%arg0: i32) -> (i32, i32) {
    %c0_i32 = arith.constant 0 : i32
    %c0_i32_0 = arith.constant 0 : i32
    %c0_i32_1 = arith.constant 0 : i32
    return %c0_i32, %c0_i32_0 : i32, i32
  }
  func.func @transform_4(%arg0: i32) -> (i32, i32) {
    %c0_i32 = arith.constant 0 : i32
    %c0_i32_0 = arith.constant 0 : i32
    %c0_i32_1 = arith.constant 0 : i32
    return %c0_i32, %c0_i32_0 : i32, i32
  }
  func.func @transform_5(%arg0: i32) -> (i32, i32, i32) {
    %c0_i32 = arith.constant 0 : i32
    %c0_i32_0 = arith.constant 0 : i32
    %c0_i32_1 = arith.constant 0 : i32
    %c0_i32_2 = arith.constant 0 : i32
    return %c0_i32, %c0_i32_0, %c0_i32_1 : i32, i32, i32
  }
  func.func @transform_6(%arg0: i32) -> (i32, i32, i32) {
    %c0_i32 = arith.constant 0 : i32
    %c0_i32_0 = arith.constant 0 : i32
    %c0_i32_1 = arith.constant 0 : i32
    %c0_i32_2 = arith.constant 0 : i32
    return %c0_i32, %c0_i32_0, %c0_i32_1 : i32, i32, i32
  }
  func.func @transform_7(%arg0: i32) -> (i32, i32, i32) {
    %c0_i32 = arith.constant 0 : i32
    %c0_i32_0 = arith.constant 0 : i32
    %c0_i32_1 = arith.constant 0 : i32
    %c0_i32_2 = arith.constant 0 : i32
    return %c0_i32, %c0_i32_0, %c0_i32_1 : i32, i32, i32
  }
  func.func @transform_8(%arg0: i32) -> (i32, i32) {
    %c0_i32 = arith.constant 0 : i32
    %c0_i32_0 = arith.constant 0 : i32
    %c0_i32_1 = arith.constant 0 : i32
    return %c0_i32, %c0_i32_0 : i32, i32
  }
  func.func @transform_9(%arg0: i32) -> (i32, i32) {
    %c0_i32 = arith.constant 0 : i32
    %c0_i32_0 = arith.constant 0 : i32
    return %arg0, %c0_i32 : i32, i32
  }
}

</mosaic_0001>

<llo_original>
// kernel: tpu_custom_call.1
$region0: #{tpu_custom_call.1}
  #allocation0 [shape = 'u32[]', space=smem, size = 0x4, offset = 0x4, fixed_abs, tag = 'smem constant byte address 0x4 - core index']
  #allocation1 [shape = 'u32[144,128]{1,0:T(1,128)}', space=vmem, size = 0x12000, scoped, tag = 'internal scratch']
  %s0 = inlined_call_operand.hbm [shape: f32[8,16,32], index: 0, kind: input, shape index: {}]
  %s1 = inlined_call_operand.hbm [shape: f32[8,32], index: 1, kind: input, shape index: {}]
  %s2 = inlined_call_operand.hbm [shape: f32[8,2,16], index: 2, kind: input, shape index: {}]
  %s3 = inlined_call_operand.hbm [shape: f32[32,32], index: 3, kind: input, shape index: {}]
  %s4 = inlined_call_operand.vmem [shape: f32[1,32], index: 4, kind: input, shape index: {}]
  %s5 = inlined_call_operand.vmem [shape: f32[3,1,32], index: 5, kind: input, shape index: {}]
  %s6 = inlined_call_operand.vmem [shape: f32[3,1,32], index: 6, kind: input, shape index: {}]
  %s7 = inlined_call_operand.hbm [shape: f32[3,32,128], index: 7, kind: input, shape index: {}]
  %s8 = inlined_call_operand.vmem [shape: f32[1,128], index: 8, kind: input, shape index: {}]
  %s9 = inlined_call_operand.hbm [shape: f32[8,128], index: 9, kind: output, shape index: {}]
  %s10 = sld [smem:[#allocation0]]
  $region66: #{tpu_custom_call.1} parent=0
    _
  %s12 = ssub.s32 1, %s10
  %s13 = scalar_select 0, %s12, %s10
  $region1: #{tpu_custom_call.1} parent=0
    #allocation2 [shape = 'u8[65536]{0}', space=vmem, size = 0x10000, scoped, tag = 'input window, operand 0, single buffered']
    #allocation3 [shape = 's32[1]{0}', space=sflag, size = 0x4, scoped, tag = 'scoped memory for tpu_custom_call.1']
    #allocation4 [shape = 's32[1]{0}', space=sflag, size = 0x4, scoped, tag = 'scoped memory for tpu_custom_call.1']
    #allocation5 [shape = 'u8[4096]{0}', space=vmem, size = 0x1000, scoped, tag = 'input window, operand 1, single buffered']
    #allocation6 [shape = 's32[1]{0}', space=sflag, size = 0x4, scoped, tag = 'scoped memory for tpu_custom_call.1']
    #allocation7 [shape = 'u8[8192]{0}', space=vmem, size = 0x2000, scoped, tag = 'input window, operand 2, single buffered']
    #allocation8 [shape = 'u8[16384]{0}', space=vmem, size = 0x4000, scoped, tag = 'input window, operand 3, single buffered']
    #allocation9 [shape = 's32[1]{0}', space=sflag, size = 0x4, scoped, tag = 'scoped memory for tpu_custom_call.1']
    #allocation10 [shape = 'u8[49152]{0}', space=vmem, size = 0xc000, scoped, tag = 'input window, operand 7, single buffered']
    #allocation11 [shape = 'u8[4096]{0}', space=vmem, size = 0x1000, scoped, tag = 'output window, operand 0, single buffered']
    %14 = vsyncpa [#allocation3], 0
    %15 = vsyncpa [#allocation6], 0
    %16 = vsyncpa [#allocation9], 0
    %17 = vsyncpa [#allocation4], 0
    // Predicated region
    $region2: #{tpu_custom_call.1} parent=1 // pred_check
      _
    $region3: #{tpu_custom_call.1} parent=1 // pred_check_branch
      %19 = sbr.rel (0) target = $region5
    $region4: #{tpu_custom_call.1} parent=1 // pred_region
      %s21 = ssub.s32 2048, 2048
      %22 = vsyncadd [#allocation3], %s21
      %s23 = sshll.u32 [#allocation2], 4
      %s24 = int_to_ptr.vmem [resolvable:$true] %s23
      %29 = dma.hbm_to_vmem [thread:$0]  %s0, 2048, %s24, [#allocation3], 128, 128, 8
    $region5: #{tpu_custom_call.1} parent=1 // pred_fallthru
      _
    // Predicated region
    $region6: #{tpu_custom_call.1} parent=1 // pred_check
      _
    $region7: #{tpu_custom_call.1} parent=1 // pred_check_branch
      %31 = sbr.rel (0) target = $region9
    $region8: #{tpu_custom_call.1} parent=1 // pred_region
      %s33 = ssub.s32 128, 128
      %34 = vsyncadd [#allocation6], %s33
      %s36 = sshll.u32 [#allocation5], 4
      %s37 = int_to_ptr.vmem [resolvable:$true] %s36
      %39 = dma.hbm_to_vmem [thread:$0]  %s1, 128, %s37, [#allocation6]
    $region9: #{tpu_custom_call.1} parent=1 // pred_fallthru
      _
    // Predicated region
    $region10: #{tpu_custom_call.1} parent=1 // pred_check
      _
    $region11: #{tpu_custom_call.1} parent=1 // pred_check_branch
      %41 = sbr.rel (0) target = $region13
    $region12: #{tpu_custom_call.1} parent=1 // pred_region
      %s43 = ssub.s32 256, 256
      %44 = vsyncadd [#allocation6], %s43
      %s45 = sshll.u32 [#allocation7], 4
      %s46 = int_to_ptr.vmem [resolvable:$true] %s45
      %51 = dma.hbm_to_vmem [thread:$0]  %s2, 256, %s46, [#allocation6], 32, 32, 2
    $region13: #{tpu_custom_call.1} parent=1 // pred_fallthru
      _
    // Predicated region
    $region14: #{tpu_custom_call.1} parent=1 // pred_check
      _
    $region15: #{tpu_custom_call.1} parent=1 // pred_check_branch
      %53 = sbr.rel (0) target = $region17
    $region16: #{tpu_custom_call.1} parent=1 // pred_region
      %s55 = ssub.s32 512, 512
      %56 = vsyncadd [#allocation9], %s55
      %s57 = sshll.u32 [#allocation8], 4
      %s58 = int_to_ptr.vmem [resolvable:$true] %s57
      %63 = dma.hbm_to_vmem [thread:$0]  %s3, 512, %s58, [#allocation9], 128, 128, 8
    $region17: #{tpu_custom_call.1} parent=1 // pred_fallthru
      _
    // Predicated region
    $region18: #{tpu_custom_call.1} parent=1 // pred_check
      _
    $region19: #{tpu_custom_call.1} parent=1 // pred_check_branch
      %65 = sbr.rel (0) target = $region21
    $region20: #{tpu_custom_call.1} parent=1 // pred_region
      _
    $region21: #{tpu_custom_call.1} parent=1 // pred_fallthru
      _
    // Predicated region
    $region22: #{tpu_custom_call.1} parent=1 // pred_check
      _
    $region23: #{tpu_custom_call.1} parent=1 // pred_check_branch
      %67 = sbr.rel (0) target = $region25
    $region24: #{tpu_custom_call.1} parent=1 // pred_region
      _
    $region25: #{tpu_custom_call.1} parent=1 // pred_fallthru
      _
    // Predicated region
    $region26: #{tpu_custom_call.1} parent=1 // pred_check
      _
    $region27: #{tpu_custom_call.1} parent=1 // pred_check_branch
      %69 = sbr.rel (0) target = $region29
    $region28: #{tpu_custom_call.1} parent=1 // pred_region
      _
    $region29: #{tpu_custom_call.1} parent=1 // pred_fallthru
      _
    // Predicated region
    $region30: #{tpu_custom_call.1} parent=1 // pred_check
      _
    $region31: #{tpu_custom_call.1} parent=1 // pred_check_branch
      %71 = sbr.rel (0) target = $region33
    $region32: #{tpu_custom_call.1} parent=1 // pred_region
      %s73 = ssub.s32 1536, 1536
      %74 = vsyncadd [#allocation9], %s73
      %s75 = sshll.u32 [#allocation10], 4
      %s76 = int_to_ptr.vmem [resolvable:$true] %s75
      %81 = dma.hbm_to_vmem [thread:$0]  %s7, 1536, %s76, [#allocation9], 128, 128, 8
    $region33: #{tpu_custom_call.1} parent=1 // pred_fallthru
      _
    // Predicated region
    $region34: #{tpu_custom_call.1} parent=1 // pred_check
      _
    $region35: #{tpu_custom_call.1} parent=1 // pred_check_branch
      %83 = sbr.rel (0) target = $region37
    $region36: #{tpu_custom_call.1} parent=1 // pred_region
      _
    $region37: #{tpu_custom_call.1} parent=1 // pred_fallthru
      _
    // Predicated region
    $region38: #{tpu_custom_call.1} parent=1 // pred_check
      _
    $region39: #{tpu_custom_call.1} parent=1 // pred_check_branch
      %85 = sbr.rel (0) target = $region41
    $region40: #{tpu_custom_call.1} parent=1 // pred_region
      %86 = dma.done [#allocation3], 2048
    $region41: #{tpu_custom_call.1} parent=1 // pred_fallthru
      _
    // Predicated region
    $region42: #{tpu_custom_call.1} parent=1 // pred_check
      _
    $region43: #{tpu_custom_call.1} parent=1 // pred_check_branch
      %88 = sbr.rel (0) target = $region45
    $region44: #{tpu_custom_call.1} parent=1 // pred_region
      %89 = dma.done [#allocation6], 128
    $region45: #{tpu_custom_call.1} parent=1 // pred_fallthru
      _
    // Predicated region
    $region46: #{tpu_custom_call.1} parent=1 // pred_check
      _
    $region47: #{tpu_custom_call.1} parent=1 // pred_check_branch
      %91 = sbr.rel (0) target = $region49
    $region48: #{tpu_custom_call.1} parent=1 // pred_region
      %92 = dma.done [#allocation6], 256
    $region49: #{tpu_custom_call.1} parent=1 // pred_fallthru
      _
    // Predicated region
    $region50: #{tpu_custom_call.1} parent=1 // pred_check
      _
    $region51: #{tpu_custom_call.1} parent=1 // pred_check_branch
      %94 = sbr.rel (0) target = $region53
    $region52: #{tpu_custom_call.1} parent=1 // pred_region
      %95 = dma.done [#allocation9], 512
    $region53: #{tpu_custom_call.1} parent=1 // pred_fallthru
      _
    // Predicated region
    $region54: #{tpu_custom_call.1} parent=1 // pred_check
      _
    $region55: #{tpu_custom_call.1} parent=1 // pred_check_branch
      %97 = sbr.rel (0) target = $region57
    $region56: #{tpu_custom_call.1} parent=1 // pred_region
      %98 = dma.done [#allocation9], 1536
    $region57: #{tpu_custom_call.1} parent=1 // pred_fallthru
      _
    %v99 = vld [vmem:[#allocation2] sm:$0xff]
    %v100 = vld [vmem:[#allocation2 + $0x8] sm:$0xff]
    %v101 = vld [vmem:[#allocation2 + $0x10] sm:$0xff]
    %v102 = vld [vmem:[#allocation2 + $0x18] sm:$0xff]
    %v103 = vld [vmem:[#allocation2 + $0x20] sm:$0xff]
    %v104 = vld [vmem:[#allocation2 + $0x28] sm:$0xff]
    %v105 = vld [vmem:[#allocation2 + $0x30] sm:$0xff]
    %v106 = vld [vmem:[#allocation2 + $0x38] sm:$0xff]
    %v107 = vld [vmem:[#allocation2 + $0x40] sm:$0xff]
    %v108 = vld [vmem:[#allocation2 + $0x48] sm:$0xff]
    %v109 = vld [vmem:[#allocation2 + $0x50] sm:$0xff]
    %v110 = vld [vmem:[#allocation2 + $0x58] sm:$0xff]
    %v111 = vld [vmem:[#allocation2 + $0x60] sm:$0xff]
    %v112 = vld [vmem:[#allocation2 + $0x68] sm:$0xff]
    %v113 = vld [vmem:[#allocation2 + $0x70] sm:$0xff]
    %v114 = vld [vmem:[#allocation2 + $0x78] sm:$0xff]
    %v115 = vld [vmem:[#allocation5] sm:$0xff]
    %v116 = vld [vmem:[#allocation7] sm:$0x3]
    %v117 = vld [vmem:[#allocation7 + $0x2] sm:$0x3]
    %v118 = vld [vmem:[#allocation7 + $0x4] sm:$0x3]
    %v119 = vld [vmem:[#allocation7 + $0x6] sm:$0x3]
    %v120 = vld [vmem:[#allocation7 + $0x8] sm:$0x3]
    %v121 = vld [vmem:[#allocation7 + $0xa] sm:$0x3]
    %v122 = vld [vmem:[#allocation7 + $0xc] sm:$0x3]
    %v123 = vld [vmem:[#allocation7 + $0xe] sm:$0x3]
    %vm124 = vcmp.ne.f32.partialorder %v116, 0.0
    %vm125 = vcmp.ne.f32.partialorder %v117, 0.0
    %vm126 = vcmp.ne.f32.partialorder %v118, 0.0
    %vm127 = vcmp.ne.f32.partialorder %v119, 0.0
    %vm128 = vcmp.ne.f32.partialorder %v120, 0.0
    %vm129 = vcmp.ne.f32.partialorder %v121, 0.0
    %vm130 = vcmp.ne.f32.partialorder %v122, 0.0
    %vm131 = vcmp.ne.f32.partialorder %v123, 0.0
    %v132 = vsel %vm124, 1, 0
    %v133 = vsel %vm125, 1, 0
    %v134 = vsel %vm126, 1, 0
    %v135 = vsel %vm127, 1, 0
    %v136 = vsel %vm128, 1, 0
    %v137 = vsel %vm129, 1, 0
    %v138 = vsel %vm130, 1, 0
    %v139 = vsel %vm131, 1, 0
    %v140 = vcvt.s32.f32 %v132
    %v141 = vcvt.s32.f32 %v133
    %v142 = vcvt.s32.f32 %v134
    %v143 = vcvt.s32.f32 %v135
    %v144 = vcvt.s32.f32 %v136
    %v145 = vcvt.s32.f32 %v137
    %v146 = vcvt.s32.f32 %v138
    %v147 = vcvt.s32.f32 %v139
    %vm148 = vcmask 123904
    %v149 = vsel %vm148, %v140, 0.0
    %150 = vadd.xlane.f32.xlu0 %v149
    %v151 = vpop.xlane.xlu0 %150
    %v152 = vsel %vm148, %v141, 0.0
    %153 = vadd.xlane.f32.xlu0 %v152
    %v154 = vpop.xlane.xlu0 %153
    %v155 = vsel %vm148, %v142, 0.0
    %156 = vadd.xlane.f32.xlu0 %v155
    %v157 = vpop.xlane.xlu0 %156
    %v158 = vsel %vm148, %v143, 0.0
    %159 = vadd.xlane.f32.xlu0 %v158
    %v160 = vpop.xlane.xlu0 %159
    %v161 = vsel %vm148, %v144, 0.0
    %162 = vadd.xlane.f32.xlu0 %v161
    %v163 = vpop.xlane.xlu0 %162
    %v164 = vsel %vm148, %v145, 0.0
    %165 = vadd.xlane.f32.xlu0 %v164
    %v166 = vpop.xlane.xlu0 %165
    %v167 = vsel %vm148, %v146, 0.0
    %168 = vadd.xlane.f32.xlu0 %v167
    %v169 = vpop.xlane.xlu0 %168
    %v170 = vsel %vm148, %v147, 0.0
    %171 = vadd.xlane.f32.xlu0 %v170
    %v172 = vpop.xlane.xlu0 %171
    %v173 = vmax.f32 %v151, 1.0
    %v174 = vmax.f32 %v154, 1.0
    %v175 = vmax.f32 %v157, 1.0
    %v176 = vmax.f32 %v160, 1.0
    %v177 = vmax.f32 %v163, 1.0
    %v178 = vmax.f32 %v166, 1.0
    %v179 = vmax.f32 %v169, 1.0
    %v180 = vmax.f32 %v172, 1.0
    %v181 = vrcp.pop %v173
    %v182 = vrcp.pop %v174
    %v183 = vrcp.pop %v175
    %v184 = vrcp.pop %v176
    %v185 = vrcp.pop %v177
    %v186 = vrcp.pop %v178
    %v187 = vrcp.pop %v179
    %v188 = vrcp.pop %v180
    %v189 = vmul.f32 %v116, %v181
    %v190 = vmul.f32 %v117, %v182
    %v191 = vmul.f32 %v118, %v183
    %v192 = vmul.f32 %v119, %v184
    %v193 = vmul.f32 %v120, %v185
    %v194 = vmul.f32 %v121, %v186
    %v195 = vmul.f32 %v122, %v187
    %v196 = vmul.f32 %v123, %v188
    %vm197 = vcmask 130048
    %v199 = vsel %vm197, %v189, 0
    %201 = vmatprep.subr.mxu0 0.0
    %202 = vmatpush1.msra.mxu0 %v99
    %203 = vmatprep.subr.mxu0 0.0
    %204 = vmatpush1.msra.mxu0 %v100
    %205 = vmatprep.subr.mxu0 0.0
    %206 = vmatpush1.msra.mxu0 0.0
    %207 = vmatprep.subr.mxu0 0.0
    %208 = vmatpush1.msra.mxu0 0.0
    %209 = vmatprep.subr.mxu0 0.0
    %210 = vmatpush1.msra.mxu0 0.0
    %211 = vmatprep.subr.mxu0 0.0
    %212 = vmatpush1.msra.mxu0 0.0
    %213 = vmatprep.subr.mxu0 0.0
    %214 = vmatpush1.msra.mxu0 0.0
    %215 = vmatprep.subr.mxu0 0.0
    %216 = vmatpush1.msra.mxu0 0.0
    %217 = vmatprep.subr.mxu0 0.0
    %218 = vmatpush1.msra.mxu0 0.0
    %219 = vmatprep.subr.mxu0 0.0
    %220 = vmatpush1.msra.mxu0 0.0
    %221 = vmatprep.subr.mxu0 0.0
    %222 = vmatpush1.msra.mxu0 0.0
    %223 = vmatprep.subr.mxu0 0.0
    %224 = vmatpush1.msra.mxu0 0.0
    %225 = vmatprep.subr.mxu0 0.0
    %226 = vmatpush1.msra.mxu0 0.0
    %227 = vmatprep.subr.mxu0 0.0
    %228 = vmatpush1.msra.mxu0 0.0
    %229 = vmatprep.subr.mxu0 0.0
    %230 = vmatpush1.msra.mxu0 0.0
    %231 = vmatprep.subr.mxu0 0.0
    %232 = vmatpush1.msra.mxu0 0.0
    %233 = vmatprep.subr.mxu0 0.0
    %234 = vmatpush1.msra.mxu0 0.0
    %235 = vmatprep.subr.mxu0 0.0
    %236 = vmatpush1.msra.mxu0 0.0
    %237 = vmatprep.subr.mxu0 0.0
    %238 = vmatpush1.msra.mxu0 0.0
    %239 = vmatprep.subr.mxu0 0.0
    %240 = vmatpush1.msra.mxu0 0.0
    %241 = vmatprep.subr.mxu0 0.0
    %242 = vmatpush1.msra.mxu0 0.0
    %243 = vmatprep.subr.mxu0 0.0
    %244 = vmatpush1.msra.mxu0 0.0
    %245 = vmatprep.subr.mxu0 0.0
    %246 = vmatpush1.msra.mxu0 0.0
    %247 = vmatprep.subr.mxu0 0.0
    %248 = vmatpush1.msra.mxu0 0.0
    %249 = vmatprep.subr.mxu0 0.0
    %250 = vmatpush1.msra.mxu0 0.0
    %251 = vmatprep.subr.mxu0 0.0
    %252 = vmatpush1.msra.mxu0 0.0
    %253 = vmatprep.subr.mxu0 0.0
    %254 = vmatpush1.msra.mxu0 0.0
    %255 = vmatprep.subr.mxu0 0.0
    %256 = vmatpush1.msra.mxu0 0.0
    %257 = vmatprep.subr.mxu0 0.0
    %258 = vmatpush1.msra.mxu0 0.0
    %259 = vmatprep.subr.mxu0 0.0
    %260 = vmatpush1.msra.mxu0 0.0
    %261 = vmatprep.subr.mxu0 0.0
    %262 = vmatpush1.msra.mxu0 0.0
    %263 = vmatprep.subr.mxu0 0.0
    %264 = vmatpush1.msra.mxu0 0.0
    %265 = vmatprep.mubr.f32.mxu0 0.0
    %266 = vmatmul.mubr.f32.gmra.mrb[0].mxu0 %v199
    %v267 = vpop.f32.mrb[0].mxu0
    %v268 = vadd.f32 0.0, %v267
    %v269 = vpop.f32.mrb[0].mxu0
    %270 = vdwg.mxu0
    %v272 = vsel %vm197, %v190, 0
    %274 = vmatprep.subr.mxu0 0.0
    %275 = vmatpush1.msra.mxu0 %v101
    %276 = vmatprep.subr.mxu0 0.0
    %277 = vmatpush1.msra.mxu0 %v102
    %278 = vmatprep.subr.mxu0 0.0
    %279 = vmatpush1.msra.mxu0 0.0
    %280 = vmatprep.subr.mxu0 0.0
    %281 = vmatpush1.msra.mxu0 0.0
    %282 = vmatprep.subr.mxu0 0.0
    %283 = vmatpush1.msra.mxu0 0.0
    %284 = vmatprep.subr.mxu0 0.0
    %285 = vmatpush1.msra.mxu0 0.0
    %286 = vmatprep.subr.mxu0 0.0
    %287 = vmatpush1.msra.mxu0 0.0
    %288 = vmatprep.subr.mxu0 0.0
    %289 = vmatpush1.msra.mxu0 0.0
    %290 = vmatprep.subr.mxu0 0.0
    %291 = vmatpush1.msra.mxu0 0.0
    %292 = vmatprep.subr.mxu0 0.0
    %293 = vmatpush1.msra.mxu0 0.0
    %294 = vmatprep.subr.mxu0 0.0
    %295 = vmatpush1.msra.mxu0 0.0
    %296 = vmatprep.subr.mxu0 0.0
    %297 = vmatpush1.msra.mxu0 0.0
    %298 = vmatprep.subr.mxu0 0.0
    %299 = vmatpush1.msra.mxu0 0.0
    %300 = vmatprep.subr.mxu0 0.0
    %301 = vmatpush1.msra.mxu0 0.0
    %302 = vmatprep.subr.mxu0 0.0
    %303 = vmatpush1.msra.mxu0 0.0
    %304 = vmatprep.subr.mxu0 0.0
    %305 = vmatpush1.msra.mxu0 0.0
    %306 = vmatprep.subr.mxu0 0.0
    %307 = vmatpush1.msra.mxu0 0.0
    %308 = vmatprep.subr.mxu0 0.0
    %309 = vmatpush1.msra.mxu0 0.0
    %310 = vmatprep.subr.mxu0 0.0
    %311 = vmatpush1.msra.mxu0 0.0
    %312 = vmatprep.subr.mxu0 0.0
    %313 = vmatpush1.msra.mxu0 0.0
    %314 = vmatprep.subr.mxu0 0.0
    %315 = vmatpush1.msra.mxu0 0.0
    %316 = vmatprep.subr.mxu0 0.0
    %317 = vmatpush1.msra.mxu0 0.0
    %318 = vmatprep.subr.mxu0 0.0
    %319 = vmatpush1.msra.mxu0 0.0
    %320 = vmatprep.subr.mxu0 0.0
    %321 = vmatpush1.msra.mxu0 0.0
    %322 = vmatprep.subr.mxu0 0.0
    %323 = vmatpush1.msra.mxu0 0.0
    %324 = vmatprep.subr.mxu0 0.0
    %325 = vmatpush1.msra.mxu0 0.0
    %326 = vmatprep.subr.mxu0 0.0
    %327 = vmatpush1.msra.mxu0 0.0
    %328 = vmatprep.subr.mxu0 0.0
    %329 = vmatpush1.msra.mxu0 0.0
    %330 = vmatprep.subr.mxu0 0.0
    %331 = vmatpush1.msra.mxu0 0.0
    %332 = vmatprep.subr.mxu0 0.0
    %333 = vmatpush1.msra.mxu0 0.0
    %334 = vmatprep.subr.mxu0 0.0
    %335 = vmatpush1.msra.mxu0 0.0
    %336 = vmatprep.subr.mxu0 0.0
    %337 = vmatpush1.msra.mxu0 0.0
    %338 = vmatprep.mubr.f32.mxu0 0.0
    %339 = vmatmul.mubr.f32.gmra.mrb[0].mxu0 %v272
    %v340 = vpop.f32.mrb[0].mxu0
    %v341 = vadd.f32 0.0, %v340
    %v342 = vpop.f32.mrb[0].mxu0
    %343 = vdwg.mxu0
    %v345 = vsel %vm197, %v191, 0
    %347 = vmatprep.subr.mxu0 0.0
    %348 = vmatpush1.msra.mxu0 %v103
    %349 = vmatprep.subr.mxu0 0.0
    %350 = vmatpush1.msra.mxu0 %v104
    %351 = vmatprep.subr.mxu0 0.0
    %352 = vmatpush1.msra.mxu0 0.0
    %353 = vmatprep.subr.mxu0 0.0
    %354 = vmatpush1.msra.mxu0 0.0
    %355 = vmatprep.subr.mxu0 0.0
    %356 = vmatpush1.msra.mxu0 0.0
    %357 = vmatprep.subr.mxu0 0.0
    %358 = vmatpush1.msra.mxu0 0.0
    %359 = vmatprep.subr.mxu0 0.0
    %360 = vmatpush1.msra.mxu0 0.0
    %361 = vmatprep.subr.mxu0 0.0
    %362 = vmatpush1.msra.mxu0 0.0
    %363 = vmatprep.subr.mxu0 0.0
    %364 = vmatpush1.msra.mxu0 0.0
    %365 = vmatprep.subr.mxu0 0.0
    %366 = vmatpush1.msra.mxu0 0.0
    %367 = vmatprep.subr.mxu0 0.0
    %368 = vmatpush1.msra.mxu0 0.0
    %369 = vmatprep.subr.mxu0 0.0
    %370 = vmatpush1.msra.mxu0 0.0
    %371 = vmatprep.subr.mxu0 0.0
    %372 = vmatpush1.msra.mxu0 0.0
    %373 = vmatprep.subr.mxu0 0.0
    %374 = vmatpush1.msra.mxu0 0.0
    %375 = vmatprep.subr.mxu0 0.0
    %376 = vmatpush1.msra.mxu0 0.0
    %377 = vmatprep.subr.mxu0 0.0
    %378 = vmatpush1.msra.mxu0 0.0
    %379 = vmatprep.subr.mxu0 0.0
    %380 = vmatpush1.msra.mxu0 0.0
    %381 = vmatprep.subr.mxu0 0.0
    %382 = vmatpush1.msra.mxu0 0.0
    %383 = vmatprep.subr.mxu0 0.0
    %384 = vmatpush1.msra.mxu0 0.0
    %385 = vmatprep.subr.mxu0 0.0
    %386 = vmatpush1.msra.mxu0 0.0
    %387 = vmatprep.subr.mxu0 0.0
    %388 = vmatpush1.msra.mxu0 0.0
    %389 = vmatprep.subr.mxu0 0.0
    %390 = vmatpush1.msra.mxu0 0.0
    %391 = vmatprep.subr.mxu0 0.0
    %392 = vmatpush1.msra.mxu0 0.0
    %393 = vmatprep.subr.mxu0 0.0
    %394 = vmatpush1.msra.mxu0 0.0
    %395 = vmatprep.subr.mxu0 0.0
    %396 = vmatpush1.msra.mxu0 0.0
    %397 = vmatprep.subr.mxu0 0.0
    %398 = vmatpush1.msra.mxu0 0.0
    %399 = vmatprep.subr.mxu0 0.0
    %400 = vmatpush1.msra.mxu0 0.0
    %401 = vmatprep.subr.mxu0 0.0
    %402 = vmatpush1.msra.mxu0 0.0
    %403 = vmatprep.subr.mxu0 0.0
    %404 = vmatpush1.msra.mxu0 0.0
    %405 = vmatprep.subr.mxu0 0.0
    %406 = vmatpush1.msra.mxu0 0.0
    %407 = vmatprep.subr.mxu0 0.0
    %408 = vmatpush1.msra.mxu0 0.0
    %409 = vmatprep.subr.mxu0 0.0
    %410 = vmatpush1.msra.mxu0 0.0
    %411 = vmatprep.mubr.f32.mxu0 0.0
    %412 = vmatmul.mubr.f32.gmra.mrb[0].mxu0 %v345
    %v413 = vpop.f32.mrb[0].mxu0
    %v414 = vadd.f32 0.0, %v413
    %v415 = vpop.f32.mrb[0].mxu0
    %416 = vdwg.mxu0
    %v418 = vsel %vm197, %v192, 0
    %420 = vmatprep.subr.mxu0 0.0
    %421 = vmatpush1.msra.mxu0 %v105
    %422 = vmatprep.subr.mxu0 0.0
    %423 = vmatpush1.msra.mxu0 %v106
    %424 = vmatprep.subr.mxu0 0.0
    %425 = vmatpush1.msra.mxu0 0.0
    %426 = vmatprep.subr.mxu0 0.0
    %427 = vmatpush1.msra.mxu0 0.0
    %428 = vmatprep.subr.mxu0 0.0
    %429 = vmatpush1.msra.mxu0 0.0
    %430 = vmatprep.subr.mxu0 0.0
    %431 = vmatpush1.msra.mxu0 0.0
    %432 = vmatprep.subr.mxu0 0.0
    %433 = vmatpush1.msra.mxu0 0.0
    %434 = vmatprep.subr.mxu0 0.0
    %435 = vmatpush1.msra.mxu0 0.0
    %436 = vmatprep.subr.mxu0 0.0
    %437 = vmatpush1.msra.mxu0 0.0
    %438 = vmatprep.subr.mxu0 0.0
    %439 = vmatpush1.msra.mxu0 0.0
    %440 = vmatprep.subr.mxu0 0.0
    %441 = vmatpush1.msra.mxu0 0.0
    %442 = vmatprep.subr.mxu0 0.0
    %443 = vmatpush1.msra.mxu0 0.0
    %444 = vmatprep.subr.mxu0 0.0
    %445 = vmatpush1.msra.mxu0 0.0
    %446 = vmatprep.subr.mxu0 0.0
    %447 = vmatpush1.msra.mxu0 0.0
    %448 = vmatprep.subr.mxu0 0.0
    %449 = vmatpush1.msra.mxu0 0.0
    %450 = vmatprep.subr.mxu0 0.0
    %451 = vmatpush1.msra.mxu0 0.0
    %452 = vmatprep.subr.mxu0 0.0
    %453 = vmatpush1.msra.mxu0 0.0
    %454 = vmatprep.subr.mxu0 0.0
    %455 = vmatpush1.msra.mxu0 0.0
    %456 = vmatprep.subr.mxu0 0.0
    %457 = vmatpush1.msra.mxu0 0.0
    %458 = vmatprep.subr.mxu0 0.0
    %459 = vmatpush1.msra.mxu0 0.0
    %460 = vmatprep.subr.mxu0 0.0
    %461 = vmatpush1.msra.mxu0 0.0
    %462 = vmatprep.subr.mxu0 0.0
    %463 = vmatpush1.msra.mxu0 0.0
    %464 = vmatprep.subr.mxu0 0.0
    %465 = vmatpush1.msra.mxu0 0.0
    %466 = vmatprep.subr.mxu0 0.0
    %467 = vmatpush1.msra.mxu0 0.0
    %468 = vmatprep.subr.mxu0 0.0
    %469 = vmatpush1.msra.mxu0 0.0
    %470 = vmatprep.subr.mxu0 0.0
    %471 = vmatpush1.msra.mxu0 0.0
    %472 = vmatprep.subr.mxu0 0.0
    %473 = vmatpush1.msra.mxu0 0.0
    %474 = vmatprep.subr.mxu0 0.0
    %475 = vmatpush1.msra.mxu0 0.0
    %476 = vmatprep.subr.mxu0 0.0
    %477 = vmatpush1.msra.mxu0 0.0
    %478 = vmatprep.subr.mxu0 0.0
    %479 = vmatpush1.msra.mxu0 0.0
    %480 = vmatprep.subr.mxu0 0.0
    %481 = vmatpush1.msra.mxu0 0.0
    %482 = vmatprep.subr.mxu0 0.0
    %483 = vmatpush1.msra.mxu0 0.0
    %484 = vmatprep.mubr.f32.mxu0 0.0
    %485 = vmatmul.mubr.f32.gmra.mrb[0].mxu0 %v418
    %v486 = vpop.f32.mrb[0].mxu0
    %v487 = vadd.f32 0.0, %v486
    %v488 = vpop.f32.mrb[0].mxu0
    %489 = vdwg.mxu0
    %v491 = vsel %vm197, %v193, 0
    %493 = vmatprep.subr.mxu0 0.0
    %494 = vmatpush1.msra.mxu0 %v107
    %495 = vmatprep.subr.mxu0 0.0
    %496 = vmatpush1.msra.mxu0 %v108
    %497 = vmatprep.subr.mxu0 0.0
    %498 = vmatpush1.msra.mxu0 0.0
    %499 = vmatprep.subr.mxu0 0.0
    %500 = vmatpush1.msra.mxu0 0.0
    %501 = vmatprep.subr.mxu0 0.0
    %502 = vmatpush1.msra.mxu0 0.0
    %503 = vmatprep.subr.mxu0 0.0
    %504 = vmatpush1.msra.mxu0 0.0
    %505 = vmatprep.subr.mxu0 0.0
    %506 = vmatpush1.msra.mxu0 0.0
    %507 = vmatprep.subr.mxu0 0.0
    %508 = vmatpush1.msra.mxu0 0.0
    %509 = vmatprep.subr.mxu0 0.0
    %510 = vmatpush1.msra.mxu0 0.0
    %511 = vmatprep.subr.mxu0 0.0
    %512 = vmatpush1.msra.mxu0 0.0
    %513 = vmatprep.subr.mxu0 0.0
    %514 = vmatpush1.msra.mxu0 0.0
    %515 = vmatprep.subr.mxu0 0.0
    %516 = vmatpush1.msra.mxu0 0.0
    %517 = vmatprep.subr.mxu0 0.0
    %518 = vmatpush1.msra.mxu0 0.0
    %519 = vmatprep.subr.mxu0 0.0
    %520 = vmatpush1.msra.mxu0 0.0
    %521 = vmatprep.subr.mxu0 0.0
    %522 = vmatpush1.msra.mxu0 0.0
    %523 = vmatprep.subr.mxu0 0.0
    %524 = vmatpush1.msra.mxu0 0.0
    %525 = vmatprep.subr.mxu0 0.0
    %526 = vmatpush1.msra.mxu0 0.0
    %527 = vmatprep.subr.mxu0 0.0
    %528 = vmatpush1.msra.mxu0 0.0
    %529 = vmatprep.subr.mxu0 0.0
    %530 = vmatpush1.msra.mxu0 0.0
    %531 = vmatprep.subr.mxu0 0.0
    %532 = vmatpush1.msra.mxu0 0.0
    %533 = vmatprep.subr.mxu0 0.0
    %534 = vmatpush1.msra.mxu0 0.0
    %535 = vmatprep.subr.mxu0 0.0
    %536 = vmatpush1.msra.mxu0 0.0
    %537 = vmatprep.subr.mxu0 0.0
    %538 = vmatpush1.msra.mxu0 0.0
    %539 = vmatprep.subr.mxu0 0.0
    %540 = vmatpush1.msra.mxu0 0.0
    %541 = vmatprep.subr.mxu0 0.0
    %542 = vmatpush1.msra.mxu0 0.0
    %543 = vmatprep.subr.mxu0 0.0
    %544 = vmatpush1.msra.mxu0 0.0
    %545 = vmatprep.subr.mxu0 0.0
    %546 = vmatpush1.msra.mxu0 0.0
    %547 = vmatprep.subr.mxu0 0.0
    %548 = vmatpush1.msra.mxu0 0.0
    %549 = vmatprep.subr.mxu0 0.0
    %550 = vmatpush1.msra.mxu0 0.0
    %551 = vmatprep.subr.mxu0 0.0
    %552 = vmatpush1.msra.mxu0 0.0
    %553 = vmatprep.subr.mxu0 0.0
    %554 = vmatpush1.msra.mxu0 0.0
    %555 = vmatprep.subr.mxu0 0.0
    %556 = vmatpush1.msra.mxu0 0.0
    %557 = vmatprep.mubr.f32.mxu0 0.0
    %558 = vmatmul.mubr.f32.gmra.mrb[0].mxu0 %v491
    %v559 = vpop.f32.mrb[0].mxu0
    %v560 = vadd.f32 0.0, %v559
    %v561 = vpop.f32.mrb[0].mxu0
    %562 = vdwg.mxu0
    %v564 = vsel %vm197, %v194, 0
    %566 = vmatprep.subr.mxu0 0.0
    %567 = vmatpush1.msra.mxu0 %v109
    %568 = vmatprep.subr.mxu0 0.0
    %569 = vmatpush1.msra.mxu0 %v110
    %570 = vmatprep.subr.mxu0 0.0
    %571 = vmatpush1.msra.mxu0 0.0
    %572 = vmatprep.subr.mxu0 0.0
    %573 = vmatpush1.msra.mxu0 0.0
    %574 = vmatprep.subr.mxu0 0.0
    %575 = vmatpush1.msra.mxu0 0.0
    %576 = vmatprep.subr.mxu0 0.0
    %577 = vmatpush1.msra.mxu0 0.0
    %578 = vmatprep.subr.mxu0 0.0
    %579 = vmatpush1.msra.mxu0 0.0
    %580 = vmatprep.subr.mxu0 0.0
    %581 = vmatpush1.msra.mxu0 0.0
    %582 = vmatprep.subr.mxu0 0.0
    %583 = vmatpush1.msra.mxu0 0.0
    %584 = vmatprep.subr.mxu0 0.0
    %585 = vmatpush1.msra.mxu0 0.0
    %586 = vmatprep.subr.mxu0 0.0
    %587 = vmatpush1.msra.mxu0 0.0
    %588 = vmatprep.subr.mxu0 0.0
    %589 = vmatpush1.msra.mxu0 0.0
    %590 = vmatprep.subr.mxu0 0.0
    %591 = vmatpush1.msra.mxu0 0.0
    %592 = vmatprep.subr.mxu0 0.0
    %593 = vmatpush1.msra.mxu0 0.0
    %594 = vmatprep.subr.mxu0 0.0
    %595 = vmatpush1.msra.mxu0 0.0
    %596 = vmatprep.subr.mxu0 0.0
    %597 = vmatpush1.msra.mxu0 0.0
    %598 = vmatprep.subr.mxu0 0.0
    %599 = vmatpush1.msra.mxu0 0.0
    %600 = vmatprep.subr.mxu0 0.0
    %601 = vmatpush1.msra.mxu0 0.0
    %602 = vmatprep.subr.mxu0 0.0
    %603 = vmatpush1.msra.mxu0 0.0
    %604 = vmatprep.subr.mxu0 0.0
    %605 = vmatpush1.msra.mxu0 0.0
    %606 = vmatprep.subr.mxu0 0.0
    %607 = vmatpush1.msra.mxu0 0.0
    %608 = vmatprep.subr.mxu0 0.0
    %609 = vmatpush1.msra.mxu0 0.0
    %610 = vmatprep.subr.mxu0 0.0
    %611 = vmatpush1.msra.mxu0 0.0
    %612 = vmatprep.subr.mxu0 0.0
    %613 = vmatpush1.msra.mxu0 0.0
    %614 = vmatprep.subr.mxu0 0.0
    %615 = vmatpush1.msra.mxu0 0.0
    %616 = vmatprep.subr.mxu0 0.0
    %617 = vmatpush1.msra.mxu0 0.0
    %618 = vmatprep.subr.mxu0 0.0
    %619 = vmatpush1.msra.mxu0 0.0
    %620 = vmatprep.subr.mxu0 0.0
    %621 = vmatpush1.msra.mxu0 0.0
    %622 = vmatprep.subr.mxu0 0.0
    %623 = vmatpush1.msra.mxu0 0.0
    %624 = vmatprep.subr.mxu0 0.0
    %625 = vmatpush1.msra.mxu0 0.0
    %626 = vmatprep.subr.mxu0 0.0
    %627 = vmatpush1.msra.mxu0 0.0
    %628 = vmatprep.subr.mxu0 0.0
    %629 = vmatpush1.msra.mxu0 0.0
    %630 = vmatprep.mubr.f32.mxu0 0.0
    %631 = vmatmul.mubr.f32.gmra.mrb[0].mxu0 %v564
    %v632 = vpop.f32.mrb[0].mxu0
    %v633 = vadd.f32 0.0, %v632
    %v634 = vpop.f32.mrb[0].mxu0
    %635 = vdwg.mxu0
    %v637 = vsel %vm197, %v195, 0
    %639 = vmatprep.subr.mxu0 0.0
    %640 = vmatpush1.msra.mxu0 %v111
    %641 = vmatprep.subr.mxu0 0.0
    %642 = vmatpush1.msra.mxu0 %v112
    %643 = vmatprep.subr.mxu0 0.0
    %644 = vmatpush1.msra.mxu0 0.0
    %645 = vmatprep.subr.mxu0 0.0
    %646 = vmatpush1.msra.mxu0 0.0
    %647 = vmatprep.subr.mxu0 0.0
    %648 = vmatpush1.msra.mxu0 0.0
    %649 = vmatprep.subr.mxu0 0.0
    %650 = vmatpush1.msra.mxu0 0.0
    %651 = vmatprep.subr.mxu0 0.0
    %652 = vmatpush1.msra.mxu0 0.0
    %653 = vmatprep.subr.mxu0 0.0
    %654 = vmatpush1.msra.mxu0 0.0
    %655 = vmatprep.subr.mxu0 0.0
    %656 = vmatpush1.msra.mxu0 0.0
    %657 = vmatprep.subr.mxu0 0.0
    %658 = vmatpush1.msra.mxu0 0.0
    %659 = vmatprep.subr.mxu0 0.0
    %660 = vmatpush1.msra.mxu0 0.0
    %661 = vmatprep.subr.mxu0 0.0
    %662 = vmatpush1.msra.mxu0 0.0
    %663 = vmatprep.subr.mxu0 0.0
    %664 = vmatpush1.msra.mxu0 0.0
    %665 = vmatprep.subr.mxu0 0.0
    %666 = vmatpush1.msra.mxu0 0.0
    %667 = vmatprep.subr.mxu0 0.0
    %668 = vmatpush1.msra.mxu0 0.0
    %669 = vmatprep.subr.mxu0 0.0
    %670 = vmatpush1.msra.mxu0 0.0
    %671 = vmatprep.subr.mxu0 0.0
    %672 = vmatpush1.msra.mxu0 0.0
    %673 = vmatprep.subr.mxu0 0.0
    %674 = vmatpush1.msra.mxu0 0.0
    %675 = vmatprep.subr.mxu0 0.0
    %676 = vmatpush1.msra.mxu0 0.0
    %677 = vmatprep.subr.mxu0 0.0
    %678 = vmatpush1.msra.mxu0 0.0
    %679 = vmatprep.subr.mxu0 0.0
    %680 = vmatpush1.msra.mxu0 0.0
    %681 = vmatprep.subr.mxu0 0.0
    %682 = vmatpush1.msra.mxu0 0.0
    %683 = vmatprep.subr.mxu0 0.0
    %684 = vmatpush1.msra.mxu0 0.0
    %685 = vmatprep.subr.mxu0 0.0
    %686 = vmatpush1.msra.mxu0 0.0
    %687 = vmatprep.subr.mxu0 0.0
    %688 = vmatpush1.msra.mxu0 0.0
    %689 = vmatprep.subr.mxu0 0.0
    %690 = vmatpush1.msra.mxu0 0.0
    %691 = vmatprep.subr.mxu0 0.0
    %692 = vmatpush1.msra.mxu0 0.0
    %693 = vmatprep.subr.mxu0 0.0
    %694 = vmatpush1.msra.mxu0 0.0
    %695 = vmatprep.subr.mxu0 0.0
    %696 = vmatpush1.msra.mxu0 0.0
    %697 = vmatprep.subr.mxu0 0.0
    %698 = vmatpush1.msra.mxu0 0.0
    %699 = vmatprep.subr.mxu0 0.0
    %700 = vmatpush1.msra.mxu0 0.0
    %701 = vmatprep.subr.mxu0 0.0
    %702 = vmatpush1.msra.mxu0 0.0
    %703 = vmatprep.mubr.f32.mxu0 0.0
    %704 = vmatmul.mubr.f32.gmra.mrb[0].mxu0 %v637
    %v705 = vpop.f32.mrb[0].mxu0
    %v706 = vadd.f32 0.0, %v705
    %v707 = vpop.f32.mrb[0].mxu0
    %708 = vdwg.mxu0
    %v710 = vsel %vm197, %v196, 0
    %712 = vmatprep.subr.mxu0 0.0
    %713 = vmatpush1.msra.mxu0 %v113
    %714 = vmatprep.subr.mxu0 0.0
    %715 = vmatpush1.msra.mxu0 %v114
    %716 = vmatprep.subr.mxu0 0.0
    %717 = vmatpush1.msra.mxu0 0.0
    %718 = vmatprep.subr.mxu0 0.0
    %719 = vmatpush1.msra.mxu0 0.0
    %720 = vmatprep.subr.mxu0 0.0
    %721 = vmatpush1.msra.mxu0 0.0
    %722 = vmatprep.subr.mxu0 0.0
    %723 = vmatpush1.msra.mxu0 0.0
    %724 = vmatprep.subr.mxu0 0.0
    %725 = vmatpush1.msra.mxu0 0.0
    %726 = vmatprep.subr.mxu0 0.0
    %727 = vmatpush1.msra.mxu0 0.0
    %728 = vmatprep.subr.mxu0 0.0
    %729 = vmatpush1.msra.mxu0 0.0
    %730 = vmatprep.subr.mxu0 0.0
    %731 = vmatpush1.msra.mxu0 0.0
    %732 = vmatprep.subr.mxu0 0.0
    %733 = vmatpush1.msra.mxu0 0.0
    %734 = vmatprep.subr.mxu0 0.0
    %735 = vmatpush1.msra.mxu0 0.0
    %736 = vmatprep.subr.mxu0 0.0
    %737 = vmatpush1.msra.mxu0 0.0
    %738 = vmatprep.subr.mxu0 0.0
    %739 = vmatpush1.msra.mxu0 0.0
    %740 = vmatprep.subr.mxu0 0.0
    %741 = vmatpush1.msra.mxu0 0.0
    %742 = vmatprep.subr.mxu0 0.0
    %743 = vmatpush1.msra.mxu0 0.0
    %744 = vmatprep.subr.mxu0 0.0
    %745 = vmatpush1.msra.mxu0 0.0
    %746 = vmatprep.subr.mxu0 0.0
    %747 = vmatpush1.msra.mxu0 0.0
    %748 = vmatprep.subr.mxu0 0.0
    %749 = vmatpush1.msra.mxu0 0.0
    %750 = vmatprep.subr.mxu0 0.0
    %751 = vmatpush1.msra.mxu0 0.0
    %752 = vmatprep.subr.mxu0 0.0
    %753 = vmatpush1.msra.mxu0 0.0
    %754 = vmatprep.subr.mxu0 0.0
    %755 = vmatpush1.msra.mxu0 0.0
    %756 = vmatprep.subr.mxu0 0.0
    %757 = vmatpush1.msra.mxu0 0.0
    %758 = vmatprep.subr.mxu0 0.0
    %759 = vmatpush1.msra.mxu0 0.0
    %760 = vmatprep.subr.mxu0 0.0
    %761 = vmatpush1.msra.mxu0 0.0
    %762 = vmatprep.subr.mxu0 0.0
    %763 = vmatpush1.msra.mxu0 0.0
    %764 = vmatprep.subr.mxu0 0.0
    %765 = vmatpush1.msra.mxu0 0.0
    %766 = vmatprep.subr.mxu0 0.0
    %767 = vmatpush1.msra.mxu0 0.0
    %768 = vmatprep.subr.mxu0 0.0
    %769 = vmatpush1.msra.mxu0 0.0
    %770 = vmatprep.subr.mxu0 0.0
    %771 = vmatpush1.msra.mxu0 0.0
    %772 = vmatprep.subr.mxu0 0.0
    %773 = vmatpush1.msra.mxu0 0.0
    %774 = vmatprep.subr.mxu0 0.0
    %775 = vmatpush1.msra.mxu0 0.0
    %776 = vmatprep.mubr.f32.mxu0 0.0
    %777 = vmatmul.mubr.f32.gmra.mrb[0].mxu0 %v710
    %v778 = vpop.f32.mrb[0].mxu0
    %v779 = vadd.f32 0.0, %v778
    %v780 = vpop.f32.mrb[0].mxu0
    %781 = vdwg.mxu0
    %v790 = vrot.slane %v341, 7
    %vm791 = vcmask 1041409
    %v792 = vsel %vm791, %v790, %v268
    %v793 = vrot.slane %v414, 6
    %vm794 = vcmask 1042434
    %v795 = vsel %vm794, %v793, %v792
    %v796 = vrot.slane %v487, 5
    %vm797 = vcmask 1043459
    %v798 = vsel %vm797, %v796, %v795
    %v799 = vrot.slane %v560, 4
    %vm800 = vcmask 1044484
    %v801 = vsel %vm800, %v799, %v798
    %v802 = vrot.slane %v633, 3
    %vm803 = vcmask 1045509
    %v804 = vsel %vm803, %v802, %v801
    %v805 = vrot.slane %v706, 2
    %vm806 = vcmask 1046534
    %v807 = vsel %vm806, %v805, %v804
    %v808 = vrot.slane %v779, 1
    %vm809 = vcmask 1047559
    %v810 = vsel %vm809, %v808, %v807
    %v811 = vrot.slane %v268, 1
    %v812 = vsel %vm791, %v341, %v811
    %v813 = vrot.slane %v414, 7
    %v814 = vsel %vm794, %v813, %v812
    %v815 = vrot.slane %v487, 6
    %v816 = vsel %vm797, %v815, %v814
    %v817 = vrot.slane %v560, 5
    %v818 = vsel %vm800, %v817, %v816
    %v819 = vrot.slane %v633, 4
    %v820 = vsel %vm803, %v819, %v818
    %v821 = vrot.slane %v706, 3
    %v822 = vsel %vm806, %v821, %v820
    %v823 = vrot.slane %v779, 2
    %v824 = vsel %vm809, %v823, %v822
    %v825 = vld [vmem:[#allocation8] sm:$0xff]
    %v826 = vld [vmem:[#allocation8 + $0x8] sm:$0xff]
    %v827 = vld [vmem:[#allocation8 + $0x10] sm:$0xff]
    %v828 = vld [vmem:[#allocation8 + $0x18] sm:$0xff]
    %v829 = vld [vmem:[%s4] sm:$0x1]
    %v831 = vlaneseq
    %v832 = vshrl.u32 %v831, 7
    %v833 = vsub.s32 0, %v832
    %v834 = vrot.slane %v829, %v833
    %vm836 = vcmask 261120
    %v837 = vsel %vm836, %v810, 0
    %v839 = vsel %vm836, %v824, 0
    %841 = vmatprep.subr.mxu0 0.0
    %842 = vmatpush1.msra.mxu0 %v825
    %843 = vmatprep.subr.mxu0 0.0
    %844 = vmatpush1.msra.mxu0 %v826
    %845 = vmatprep.subr.mxu0 0.0
    %846 = vmatpush1.msra.mxu0 %v827
    %847 = vmatprep.subr.mxu0 0.0
    %848 = vmatpush1.msra.mxu0 %v828
    %849 = vmatprep.subr.mxu0 0.0
    %850 = vmatpush1.msra.mxu0 0.0
    %851 = vmatprep.subr.mxu0 0.0
    %852 = vmatpush1.msra.mxu0 0.0
    %853 = vmatprep.subr.mxu0 0.0
    %854 = vmatpush1.msra.mxu0 0.0
    %855 = vmatprep.subr.mxu0 0.0
    %856 = vmatpush1.msra.mxu0 0.0
    %857 = vmatprep.subr.mxu0 0.0
    %858 = vmatpush1.msra.mxu0 0.0
    %859 = vmatprep.subr.mxu0 0.0
    %860 = vmatpush1.msra.mxu0 0.0
    %861 = vmatprep.subr.mxu0 0.0
    %862 = vmatpush1.msra.mxu0 0.0
    %863 = vmatprep.subr.mxu0 0.0
    %864 = vmatpush1.msra.mxu0 0.0
    %865 = vmatprep.subr.mxu0 0.0
    %866 = vmatpush1.msra.mxu0 0.0
    %867 = vmatprep.subr.mxu0 0.0
    %868 = vmatpush1.msra.mxu0 0.0
    %869 = vmatprep.subr.mxu0 0.0
    %870 = vmatpush1.msra.mxu0 0.0
    %871 = vmatprep.subr.mxu0 0.0
    %872 = vmatpush1.msra.mxu0 0.0
    %873 = vmatprep.subr.mxu0 0.0
    %874 = vmatpush1.msra.mxu0 0.0
    %875 = vmatprep.subr.mxu0 0.0
    %876 = vmatpush1.msra.mxu0 0.0
    %877 = vmatprep.subr.mxu0 0.0
    %878 = vmatpush1.msra.mxu0 0.0
    %879 = vmatprep.subr.mxu0 0.0
    %880 = vmatpush1.msra.mxu0 0.0
    %881 = vmatprep.subr.mxu0 0.0
    %882 = vmatpush1.msra.mxu0 0.0
    %883 = vmatprep.subr.mxu0 0.0
    %884 = vmatpush1.msra.mxu0 0.0
    %885 = vmatprep.subr.mxu0 0.0
    %886 = vmatpush1.msra.mxu0 0.0
    %887 = vmatprep.subr.mxu0 0.0
    %888 = vmatpush1.msra.mxu0 0.0
    %889 = vmatprep.subr.mxu0 0.0
    %890 = vmatpush1.msra.mxu0 0.0
    %891 = vmatprep.subr.mxu0 0.0
    %892 = vmatpush1.msra.mxu0 0.0
    %893 = vmatprep.subr.mxu0 0.0
    %894 = vmatpush1.msra.mxu0 0.0
    %895 = vmatprep.subr.mxu0 0.0
    %896 = vmatpush1.msra.mxu0 0.0
    %897 = vmatprep.subr.mxu0 0.0
    %898 = vmatpush1.msra.mxu0 0.0
    %899 = vmatprep.subr.mxu0 0.0
    %900 = vmatpush1.msra.mxu0 0.0
    %901 = vmatprep.subr.mxu0 0.0
    %902 = vmatpush1.msra.mxu0 0.0
    %903 = vmatprep.subr.mxu0 0.0
    %904 = vmatpush1.msra.mxu0 0.0
    %905 = vmatprep.mubr.f32.mxu0 0.0
    %906 = vmatmul.mubr.f32.gmra.mrb[0].mxu0 %v837
    %v907 = vpop.f32.mrb[0].mxu0
    %v908 = vadd.f32 %v834, %v907
    %v909 = vpop.f32.mrb[0].mxu0
    %910 = vmatprep.mubr.f32.mxu0 0.0
    %911 = vmatmul.mubr.f32.gmra.mrb[0].mxu0 %v839
    %v912 = vpop.f32.mrb[0].mxu0
    %v913 = vadd.f32 %v834, %v912
    %v914 = vpop.f32.mrb[0].mxu0
    %915 = vdwg.mxu0
    %v916 = vtanh.pop %v908
    %v917 = vtanh.pop %v913
    %v918 = vsel %vm836, %v115, 0.0
    %919 = vadd.xlane.f32.xlu0 %v918
    %v920 = vpop.xlane.xlu0 %919
    %v921 = vsel %vm836, %v916, 0.0
    %922 = vadd.xlane.f32.xlu0 %v921
    %v923 = vpop.xlane.xlu0 %922
    %v924 = vadd.f32 %v920, %v923
    %v925 = vsel %vm836, %v917, 0.0
    %926 = vadd.xlane.f32.xlu0 %v925
    %v927 = vpop.xlane.xlu0 %926
    %v928 = vadd.f32 %v924, %v927
    %v929 = vrcp.pop 96.0
    %v930 = vmul.f32 %v928, %v929
    %v931 = vsub.f32 %v115, %v930
    %v932 = vmul.f32 %v931, %v931
    %v933 = vsel %vm836, %v932, 0.0
    %934 = vadd.xlane.f32.xlu0 %v933
    %v935 = vpop.xlane.xlu0 %934
    %v936 = vsub.f32 %v916, %v930
    %v937 = vmul.f32 %v936, %v936
    %v938 = vsel %vm836, %v937, 0.0
    %939 = vadd.xlane.f32.xlu0 %v938
    %v940 = vpop.xlane.xlu0 %939
    %v941 = vadd.f32 %v935, %v940
    %v942 = vsub.f32 %v917, %v930
    %v943 = vmul.f32 %v942, %v942
    %v944 = vsel %vm836, %v943, 0.0
    %945 = vadd.xlane.f32.xlu0 %v944
    %v946 = vpop.xlane.xlu0 %945
    %v947 = vadd.f32 %v941, %v946
    %v948 = vmul.f32 %v947, %v929
    %v949 = vadd.f32 %v948, 1e-05
    %v950 = vrsqrt.pop %v949
    %v951 = vld [vmem:[%s5] sm:$0x1]
    %v952 = vld [vmem:[%s5 + $0x1] sm:$0x1]
    %v953 = vld [vmem:[%s5 + $0x2] sm:$0x1]
    %v954 = vld [vmem:[%s6] sm:$0x1]
    %v955 = vld [vmem:[%s6 + $0x1] sm:$0x1]
    %v956 = vld [vmem:[%s6 + $0x2] sm:$0x1]
    %v957 = vmul.f32 %v931, %v950
    %v959 = vlaneseq
    %v960 = vshrl.u32 %v959, 7
    %v961 = vsub.s32 0, %v960
    %v962 = vrot.slane %v951, %v961
    %v964 = vmul.f32 %v957, %v962
    %v966 = vlaneseq
    %v967 = vshrl.u32 %v966, 7
    %v968 = vsub.s32 0, %v967
    %v969 = vrot.slane %v954, %v968
    %v971 = vadd.f32 %v964, %v969
    %v972 = vmul.f32 %v936, %v950
    %v974 = vlaneseq
    %v975 = vshrl.u32 %v974, 7
    %v976 = vsub.s32 0, %v975
    %v977 = vrot.slane %v952, %v976
    %v979 = vmul.f32 %v972, %v977
    %v981 = vlaneseq
    %v982 = vshrl.u32 %v981, 7
    %v983 = vsub.s32 0, %v982
    %v984 = vrot.slane %v955, %v983
    %v986 = vadd.f32 %v979, %v984
    %v987 = vmul.f32 %v942, %v950
    %v989 = vlaneseq
    %v990 = vshrl.u32 %v989, 7
    %v991 = vsub.s32 0, %v990
    %v992 = vrot.slane %v953, %v991
    %v994 = vmul.f32 %v987, %v992
    %v996 = vlaneseq
    %v997 = vshrl.u32 %v996, 7
    %v998 = vsub.s32 0, %v997
    %v999 = vrot.slane %v956, %v998
    %v1001 = vadd.f32 %v994, %v999
    %v1002 = vld [vmem:[#allocation10] sm:$0xff]
    %v1003 = vld [vmem:[#allocation10 + $0x8] sm:$0xff]
    %v1004 = vld [vmem:[#allocation10 + $0x10] sm:$0xff]
    %v1005 = vld [vmem:[#allocation10 + $0x18] sm:$0xff]
    %v1006 = vld [vmem:[#allocation10 + $0x20] sm:$0xff]
    %v1007 = vld [vmem:[#allocation10 + $0x28] sm:$0xff]
    %v1008 = vld [vmem:[#allocation10 + $0x30] sm:$0xff]
    %v1009 = vld [vmem:[#allocation10 + $0x38] sm:$0xff]
    %v1010 = vld [vmem:[#allocation10 + $0x40] sm:$0xff]
    %v1011 = vld [vmem:[#allocation10 + $0x48] sm:$0xff]
    %v1012 = vld [vmem:[#allocation10 + $0x50] sm:$0xff]
    %v1013 = vld [vmem:[#allocation10 + $0x58] sm:$0xff]
    %v1015 = vsel %vm836, %v986, 0
    %1017 = vmatprep.subr.mxu0 0.0
    %1018 = vmatpush1.msra.mxu0 %v1006
    %1019 = vmatprep.subr.mxu0 0.0
    %1020 = vmatpush1.msra.mxu0 %v1007
    %1021 = vmatprep.subr.mxu0 0.0
    %1022 = vmatpush1.msra.mxu0 %v1008
    %1023 = vmatprep.subr.mxu0 0.0
    %1024 = vmatpush1.msra.mxu0 %v1009
    %1025 = vmatprep.subr.mxu0 0.0
    %1026 = vmatpush1.msra.mxu0 0.0
    %1027 = vmatprep.subr.mxu0 0.0
    %1028 = vmatpush1.msra.mxu0 0.0
    %1029 = vmatprep.subr.mxu0 0.0
    %1030 = vmatpush1.msra.mxu0 0.0
    %1031 = vmatprep.subr.mxu0 0.0
    %1032 = vmatpush1.msra.mxu0 0.0
    %1033 = vmatprep.subr.mxu0 0.0
    %1034 = vmatpush1.msra.mxu0 0.0
    %1035 = vmatprep.subr.mxu0 0.0
    %1036 = vmatpush1.msra.mxu0 0.0
    %1037 = vmatprep.subr.mxu0 0.0
    %1038 = vmatpush1.msra.mxu0 0.0
    %1039 = vmatprep.subr.mxu0 0.0
    %1040 = vmatpush1.msra.mxu0 0.0
    %1041 = vmatprep.subr.mxu0 0.0
    %1042 = vmatpush1.msra.mxu0 0.0
    %1043 = vmatprep.subr.mxu0 0.0
    %1044 = vmatpush1.msra.mxu0 0.0
    %1045 = vmatprep.subr.mxu0 0.0
    %1046 = vmatpush1.msra.mxu0 0.0
    %1047 = vmatprep.subr.mxu0 0.0
    %1048 = vmatpush1.msra.mxu0 0.0
    %1049 = vmatprep.subr.mxu0 0.0
    %1050 = vmatpush1.msra.mxu0 0.0
    %1051 = vmatprep.subr.mxu0 0.0
    %1052 = vmatpush1.msra.mxu0 0.0
    %1053 = vmatprep.subr.mxu0 0.0
    %1054 = vmatpush1.msra.mxu0 0.0
    %1055 = vmatprep.subr.mxu0 0.0
    %1056 = vmatpush1.msra.mxu0 0.0
    %1057 = vmatprep.subr.mxu0 0.0
    %1058 = vmatpush1.msra.mxu0 0.0
    %1059 = vmatprep.subr.mxu0 0.0
    %1060 = vmatpush1.msra.mxu0 0.0
    %1061 = vmatprep.subr.mxu0 0.0
    %1062 = vmatpush1.msra.mxu0 0.0
    %1063 = vmatprep.subr.mxu0 0.0
    %1064 = vmatpush1.msra.mxu0 0.0
    %1065 = vmatprep.subr.mxu0 0.0
    %1066 = vmatpush1.msra.mxu0 0.0
    %1067 = vmatprep.subr.mxu0 0.0
    %1068 = vmatpush1.msra.mxu0 0.0
    %1069 = vmatprep.subr.mxu0 0.0
    %1070 = vmatpush1.msra.mxu0 0.0
    %1071 = vmatprep.subr.mxu0 0.0
    %1072 = vmatpush1.msra.mxu0 0.0
    %1073 = vmatprep.subr.mxu0 0.0
    %1074 = vmatpush1.msra.mxu0 0.0
    %1075 = vmatprep.subr.mxu0 0.0
    %1076 = vmatpush1.msra.mxu0 0.0
    %1077 = vmatprep.subr.mxu0 0.0
    %1078 = vmatpush1.msra.mxu0 0.0
    %1079 = vmatprep.subr.mxu0 0.0
    %1080 = vmatpush1.msra.mxu0 0.0
    %1081 = vmatprep.mubr.f32.mxu0 0.0
    %1082 = vmatmul.mubr.f32.gmra.mrb[0].mxu0 %v1015
    %v1083 = vpop.f32.mrb[0].mxu0
    %v1084 = vadd.f32 0.0, %v1083
    %v1085 = vpop.f32.mrb[0].mxu0
    %1086 = vdwg.mxu0
    %v1088 = vsel %vm836, %v971, 0
    %1090 = vmatprep.subr.mxu0 0.0
    %1091 = vmatpush1.msra.mxu0 %v1002
    %1092 = vmatprep.subr.mxu0 0.0
    %1093 = vmatpush1.msra.mxu0 %v1003
    %1094 = vmatprep.subr.mxu0 0.0
    %1095 = vmatpush1.msra.mxu0 %v1004
    %1096 = vmatprep.subr.mxu0 0.0
    %1097 = vmatpush1.msra.mxu0 %v1005
    %1098 = vmatprep.subr.mxu0 0.0
    %1099 = vmatpush1.msra.mxu0 0.0
    %1100 = vmatprep.subr.mxu0 0.0
    %1101 = vmatpush1.msra.mxu0 0.0
    %1102 = vmatprep.subr.mxu0 0.0
    %1103 = vmatpush1.msra.mxu0 0.0
    %1104 = vmatprep.subr.mxu0 0.0
    %1105 = vmatpush1.msra.mxu0 0.0
    %1106 = vmatprep.subr.mxu0 0.0
    %1107 = vmatpush1.msra.mxu0 0.0
    %1108 = vmatprep.subr.mxu0 0.0
    %1109 = vmatpush1.msra.mxu0 0.0
    %1110 = vmatprep.subr.mxu0 0.0
    %1111 = vmatpush1.msra.mxu0 0.0
    %1112 = vmatprep.subr.mxu0 0.0
    %1113 = vmatpush1.msra.mxu0 0.0
    %1114 = vmatprep.subr.mxu0 0.0
    %1115 = vmatpush1.msra.mxu0 0.0
    %1116 = vmatprep.subr.mxu0 0.0
    %1117 = vmatpush1.msra.mxu0 0.0
    %1118 = vmatprep.subr.mxu0 0.0
    %1119 = vmatpush1.msra.mxu0 0.0
    %1120 = vmatprep.subr.mxu0 0.0
    %1121 = vmatpush1.msra.mxu0 0.0
    %1122 = vmatprep.subr.mxu0 0.0
    %1123 = vmatpush1.msra.mxu0 0.0
    %1124 = vmatprep.subr.mxu0 0.0
    %1125 = vmatpush1.msra.mxu0 0.0
    %1126 = vmatprep.subr.mxu0 0.0
    %1127 = vmatpush1.msra.mxu0 0.0
    %1128 = vmatprep.subr.mxu0 0.0
    %1129 = vmatpush1.msra.mxu0 0.0
    %1130 = vmatprep.subr.mxu0 0.0
    %1131 = vmatpush1.msra.mxu0 0.0
    %1132 = vmatprep.subr.mxu0 0.0
    %1133 = vmatpush1.msra.mxu0 0.0
    %1134 = vmatprep.subr.mxu0 0.0
    %1135 = vmatpush1.msra.mxu0 0.0
    %1136 = vmatprep.subr.mxu0 0.0
    %1137 = vmatpush1.msra.mxu0 0.0
    %1138 = vmatprep.subr.mxu0 0.0
    %1139 = vmatpush1.msra.mxu0 0.0
    %1140 = vmatprep.subr.mxu0 0.0
    %1141 = vmatpush1.msra.mxu0 0.0
    %1142 = vmatprep.subr.mxu0 0.0
    %1143 = vmatpush1.msra.mxu0 0.0
    %1144 = vmatprep.subr.mxu0 0.0
    %1145 = vmatpush1.msra.mxu0 0.0
    %1146 = vmatprep.subr.mxu0 0.0
    %1147 = vmatpush1.msra.mxu0 0.0
    %1148 = vmatprep.subr.mxu0 0.0
    %1149 = vmatpush1.msra.mxu0 0.0
    %1150 = vmatprep.subr.mxu0 0.0
    %1151 = vmatpush1.msra.mxu0 0.0
    %1152 = vmatprep.subr.mxu0 0.0
    %1153 = vmatpush1.msra.mxu0 0.0
    %1154 = vmatprep.mubr.f32.mxu0 0.0
    %1155 = vmatmul.mubr.f32.gmra.mrb[0].mxu0 %v1088
    %v1156 = vpop.f32.mrb[0].mxu0
    %v1157 = vadd.f32 %v1084, %v1156
    %v1158 = vpop.f32.mrb[0].mxu0
    %1159 = vdwg.mxu0
    %v1161 = vsel %vm836, %v1001, 0
    %1163 = vmatprep.subr.mxu0 0.0
    %1164 = vmatpush1.msra.mxu0 %v1010
    %1165 = vmatprep.subr.mxu0 0.0
    %1166 = vmatpush1.msra.mxu0 %v1011
    %1167 = vmatprep.subr.mxu0 0.0
    %1168 = vmatpush1.msra.mxu0 %v1012
    %1169 = vmatprep.subr.mxu0 0.0
    %1170 = vmatpush1.msra.mxu0 %v1013
    %1171 = vmatprep.subr.mxu0 0.0
    %1172 = vmatpush1.msra.mxu0 0.0
    %1173 = vmatprep.subr.mxu0 0.0
    %1174 = vmatpush1.msra.mxu0 0.0
    %1175 = vmatprep.subr.mxu0 0.0
    %1176 = vmatpush1.msra.mxu0 0.0
    %1177 = vmatprep.subr.mxu0 0.0
    %1178 = vmatpush1.msra.mxu0 0.0
    %1179 = vmatprep.subr.mxu0 0.0
    %1180 = vmatpush1.msra.mxu0 0.0
    %1181 = vmatprep.subr.mxu0 0.0
    %1182 = vmatpush1.msra.mxu0 0.0
    %1183 = vmatprep.subr.mxu0 0.0
    %1184 = vmatpush1.msra.mxu0 0.0
    %1185 = vmatprep.subr.mxu0 0.0
    %1186 = vmatpush1.msra.mxu0 0.0
    %1187 = vmatprep.subr.mxu0 0.0
    %1188 = vmatpush1.msra.mxu0 0.0
    %1189 = vmatprep.subr.mxu0 0.0
    %1190 = vmatpush1.msra.mxu0 0.0
    %1191 = vmatprep.subr.mxu0 0.0
    %1192 = vmatpush1.msra.mxu0 0.0
    %1193 = vmatprep.subr.mxu0 0.0
    %1194 = vmatpush1.msra.mxu0 0.0
    %1195 = vmatprep.subr.mxu0 0.0
    %1196 = vmatpush1.msra.mxu0 0.0
    %1197 = vmatprep.subr.mxu0 0.0
    %1198 = vmatpush1.msra.mxu0 0.0
    %1199 = vmatprep.subr.mxu0 0.0
    %1200 = vmatpush1.msra.mxu0 0.0
    %1201 = vmatprep.subr.mxu0 0.0
    %1202 = vmatpush1.msra.mxu0 0.0
    %1203 = vmatprep.subr.mxu0 0.0
    %1204 = vmatpush1.msra.mxu0 0.0
    %1205 = vmatprep.subr.mxu0 0.0
    %1206 = vmatpush1.msra.mxu0 0.0
    %1207 = vmatprep.subr.mxu0 0.0
    %1208 = vmatpush1.msra.mxu0 0.0
    %1209 = vmatprep.subr.mxu0 0.0
    %1210 = vmatpush1.msra.mxu0 0.0
    %1211 = vmatprep.subr.mxu0 0.0
    %1212 = vmatpush1.msra.mxu0 0.0
    %1213 = vmatprep.subr.mxu0 0.0
    %1214 = vmatpush1.msra.mxu0 0.0
    %1215 = vmatprep.subr.mxu0 0.0
    %1216 = vmatpush1.msra.mxu0 0.0
    %1217 = vmatprep.subr.mxu0 0.0
    %1218 = vmatpush1.msra.mxu0 0.0
    %1219 = vmatprep.subr.mxu0 0.0
    %1220 = vmatpush1.msra.mxu0 0.0
    %1221 = vmatprep.subr.mxu0 0.0
    %1222 = vmatpush1.msra.mxu0 0.0
    %1223 = vmatprep.subr.mxu0 0.0
    %1224 = vmatpush1.msra.mxu0 0.0
    %1225 = vmatprep.subr.mxu0 0.0
    %1226 = vmatpush1.msra.mxu0 0.0
    %1227 = vmatprep.mubr.f32.mxu0 0.0
    %1228 = vmatmul.mubr.f32.gmra.mrb[0].mxu0 %v1161
    %v1229 = vpop.f32.mrb[0].mxu0
    %v1230 = vadd.f32 0.0, %v1229
    %v1231 = vpop.f32.mrb[0].mxu0
    %1232 = vdwg.mxu0
    %v1233 = vadd.f32 %v1157, %v1230
    %v1234 = vld [vmem:[%s8] sm:$0x1]
    %v1236 = vlaneseq
    %v1237 = vshrl.u32 %v1236, 7
    %v1238 = vsub.s32 0, %v1237
    %v1239 = vrot.slane %v1234, %v1238
    %v1241 = vadd.f32 %v1233, %v1239
    %1242 = vst [vmem:[#allocation11] sm:$0xff] %v1241
    // Predicated region
    $region58: #{tpu_custom_call.1} parent=1 // pred_check
      _
    $region59: #{tpu_custom_call.1} parent=1 // pred_check_branch
      %1244 = sbr.rel (0) target = $region61
    $region60: #{tpu_custom_call.1} parent=1 // pred_region
      %s1246 = ssub.s32 128, 128
      %1247 = vsyncadd [#allocation4], %s1246
      %s1249 = sshll.u32 [#allocation11], 4
      %s1250 = int_to_ptr.vmem [resolvable:$true] %s1249
      %1252 = dma.vmem_to_hbm [thread:$0]  %s1250, 128, %s9, [#allocation4]
    $region61: #{tpu_custom_call.1} parent=1 // pred_fallthru
      _
    // Predicated region
    $region62: #{tpu_custom_call.1} parent=1 // pred_check
      _
    $region63: #{tpu_custom_call.1} parent=1 // pred_check_branch
      %1254 = sbr.rel (0) target = $region65
    $region64: #{tpu_custom_call.1} parent=1 // pred_region
      %1255 = dma.done [#allocation4], 128
    $region65: #{tpu_custom_call.1} parent=1 // pred_fallthru
      _
    %1256 = vsyncpa [#allocation3], 1
    %1257 = vsyncpa [#allocation6], 1
    %1258 = vsyncpa [#allocation9], 1
    %1259 = vsyncpa [#allocation4], 1

</llo_original>
